<compile_context>
chip_gen: v7x
topology: tpu7x:2x2x1
jax: 0.10.0
libtpu: 0.0.40
codegen_flags: <defaults>
</compile_context>

<pallas_src>
import functools
import math

import jax
import jax.numpy as jnp
from jax import lax
from jax.experimental import pallas as pl
from jax.experimental.pallas import tpu as pltpu


# ----------------------------------------------------------------------------
# Fused kernel: one (batch, q-tile, kv-tile) step per grid point.
# ----------------------------------------------------------------------------
def _pair_bias_attn_kernel(
    xq_ref,     # (1, Tq, D)      f32   query rows for this q tile
    xk_ref,     # (1, Tk, D)      f32   query rows for this kv tile (same array)
    pairs_ref,  # (1, Tq, Tk, P)  bf16  edge features tile
    wq_ref,     # (D, D)          bf16  q_proj (scaling folded in), y = x @ w
    wk_ref,     # (D, D)          bf16  k_proj
    wv_ref,     # (D, D)          bf16  v_proj
    wo_ref,     # (D, D)          bf16  out_proj weight
    bo_ref,     # (1, D)          f32   out_proj bias
    wp_ref,     # (P, H)          bf16  pairs_proj weight (y = pn @ wp)
    gq_ref,     # (1, D)          f32   LayerNorm(query) gamma
    bq_ref,     # (1, D)          f32   LayerNorm(query) beta
    gp_ref,     # (1, P)          f32   LayerNorm(pairs) gamma
    bp_ref,     # (1, P)          f32   LayerNorm(pairs) beta
    o_ref,      # (1, Tq, D)      f32   output tile
    q_sc,       # (Tq, D)         bf16  scratch: scaled-Q stash for the kv sweep
    m_sc,       # (H, Tq, 1)      f32   scratch: online-softmax row max
    l_sc,       # (H, Tq, 1)      f32   scratch: online-softmax denominator
    acc_sc,     # (H, Tq, Dh)     f32   scratch: online-softmax accumulator
    *,
    num_heads: int,
    eps: float = 1e-5,
):
    H = num_heads
    Tq, D = xq_ref.shape[1], xq_ref.shape[2]
    Tk = xk_ref.shape[1]
    P = pairs_ref.shape[3]
    Dh = D // H
    ki = pl.program_id(2)

    def layer_norm(x, g, b):
        mu = jnp.mean(x, axis=-1, keepdims=True)
        xc = x - mu
        var = jnp.mean(xc * xc, axis=-1, keepdims=True)
        return xc * lax.rsqrt(var + eps) * g + b

    # ---- kv step 0: init online-softmax state, stash scaled Q ----------------
    @pl.when(ki == 0)
    def _():
        xn_q = layer_norm(xq_ref[0], gq_ref[...], bq_ref[...])          # (Tq, D) f32
        q_sc[...] = jnp.dot(
            xn_q.astype(jnp.bfloat16), wq_ref[...],
            preferred_element_type=jnp.float32,
        ).astype(jnp.bfloat16)                                          # (Tq, D) bf16
        m_sc[...] = jnp.full_like(m_sc, -jnp.inf)
        l_sc[...] = jnp.zeros_like(l_sc)
        acc_sc[...] = jnp.zeros_like(acc_sc)

    # ---- K / V projection for this kv tile ----------------------------------
    xn_k = layer_norm(xk_ref[0], gq_ref[...], bq_ref[...])              # (Tk, D) f32
    xk_b = xn_k.astype(jnp.bfloat16)
    k_t = jnp.dot(xk_b, wk_ref[...],
                  preferred_element_type=jnp.float32).astype(jnp.bfloat16)   # (Tk, D)
    v_t = jnp.dot(xk_b, wv_ref[...],
                  preferred_element_type=jnp.float32).astype(jnp.bfloat16)   # (Tk, D)

    # ---- pair bias for this (q, kv) tile: single MXU matmul over P ----------
    pn = layer_norm(pairs_ref[0].astype(jnp.float32),
                    gp_ref[...], bp_ref[...])                            # (Tq, Tk, P) f32
    bias = jnp.dot(
        pn.reshape(Tq * Tk, P).astype(jnp.bfloat16), wp_ref[...],
        preferred_element_type=jnp.float32,
    ).reshape(Tq, Tk, H)                                                 # (Tq, Tk, H) f32

    # ---- per-head online softmax (H small, unrolled) -------------------------
    for h in range(H):
        qh = q_sc[:, h * Dh:(h + 1) * Dh]                                # (Tq, Dh) bf16
        kh = k_t[:, h * Dh:(h + 1) * Dh]                                 # (Tk, Dh) bf16
        vh = v_t[:, h * Dh:(h + 1) * Dh]                                 # (Tk, Dh) bf16

        # scores: contract last dims directly (no K transpose materialized)
        s = lax.dot_general(qh, kh, (((1,), (1,)), ((), ())),
                            preferred_element_type=jnp.float32)          # (Tq, Tk) f32
        s = s + bias[:, :, h]

        m_prev = m_sc[h]                                                 # (Tq, 1)
        m_new = jnp.maximum(m_prev, jnp.max(s, axis=-1, keepdims=True))
        alpha = jnp.exp(m_prev - m_new)
        p = jnp.exp(s - m_new)
        l_sc[h] = alpha * l_sc[h] + jnp.sum(p, axis=-1, keepdims=True)
        acc_sc[h] = alpha * acc_sc[h] + jnp.dot(
            p.astype(jnp.bfloat16), vh, preferred_element_type=jnp.float32)
        m_sc[h] = m_new

    # ---- last kv step: normalize, merge heads, out_proj ----------------------
    @pl.when(ki == pl.num_programs(2) - 1)
    def _():
        head_outs = []
        for h in range(H):
            inv_l = pl.reciprocal(l_sc[h], approx=True)                  # EUP slot
            head_outs.append(acc_sc[h] * inv_l)                          # (Tq, Dh) f32
        attn = jnp.concatenate(head_outs, axis=-1)                       # (Tq, D) lane-dense
        o_ref[0] = jnp.dot(attn.astype(jnp.bfloat16), wo_ref[...],
                           preferred_element_type=jnp.float32) + bo_ref[...]


# ----------------------------------------------------------------------------
# Helpers
# ----------------------------------------------------------------------------
def _pick_tile(length: int, target: int) -> int:
    """Largest multiple-of-8 divisor of `length` that is <= target (or full length)."""
    if length <= target:
        return length
    if length % target == 0:
        return target
    start = min(target, (length // 8) * 8)
    for t in range(start, 7, -8):
        if length % t == 0:
            return t
    return length  # TODO(synk): pad/mask ragged lengths instead of whole-L tiles


def _vmem_limit_bytes(tq, tk, D, P, H, Dh):
    """Rough VMEM budget for the double-buffered tiles + scratch + body temporaries."""
    f32, b16, lane = 4, 2, 128
    pad = lambda n: max(n, lane)
    stream = 2 * (tq * D * f32 + tk * D * f32 + tq * tk * P * b16 + tq * D * f32)
    weights = 2 * ((4 * D * D + P * H) * b16 + (3 * D + 2 * P) * f32)
    scratch = (tq * pad(D) * b16 + 2 * H * tq * lane * f32 + H * tq * pad(Dh) * f32)
    body = tq * tk * P * f32 + tq * tk * (H + 6) * f32 + 4 * tq * pad(D) * f32
    est = 2 * (stream + weights + scratch + body)
    # NOTE: v7x physical VMEM is 64 MiB; if est exceeds that, shrink q_tile/kv_tile.
    return int(min(max(est, 32 * 1024 * 1024), 128 * 1024 * 1024))


# ----------------------------------------------------------------------------
# Wrapper: PairBiasSelfAttention.forward (need_weights=False, no masks)
# ----------------------------------------------------------------------------
def pair_bias_self_attention(query, pairs, params, num_heads, *,
                             q_tile=128, kv_tile=128):
    """query: (L, B, D) f32, pairs: (B, L, L, P) f32 -> (L, B, D) f32."""
    L, B, D = query.shape
    P = pairs.shape[-1]
    H = num_heads
    assert D % H == 0, "embed_dim must be divisible by num_heads"
    Dh = D // H
    scaling = Dh ** -0.5

    tq = _pick_tile(L, q_tile)
    tk = _pick_tile(L, kv_tile)
    nq, nk = L // tq, L // tk

    # One-time operand prep: fold q scaling into wq, pre-cast MXU operands to bf16.
    wq = (params["wq"] * scaling).astype(jnp.bfloat16)    # (D, D)
    wk = params["wk"].astype(jnp.bfloat16)                # (D, D)
    wv = params["wv"].astype(jnp.bfloat16)                # (D, D)
    wo = params["wo"].astype(jnp.bfloat16)                # (D, D)
    bo = params["bo"].reshape(1, D)
    wp = params["wp"].astype(jnp.bfloat16)                # (P, H) — MXU bias matmul
    gq = params["ln_q_g"].reshape(1, D)
    bq = params["ln_q_b"].reshape(1, D)
    gp = params["ln_p_g"].reshape(1, P)
    bp = params["ln_p_b"].reshape(1, P)

    # Batch-major relayout of the input; pairs streamed in bf16 (dominant HBM read).
    xb = jnp.transpose(query, (1, 0, 2))                  # (B, L, D)
    pairs_b16 = pairs.astype(jnp.bfloat16)                # (B, L, L, P)

    kernel = functools.partial(_pair_bias_attn_kernel, num_heads=H)

    flops = int(B * (2 * L * D * D                        # q proj
                     + nq * 4 * L * D * D                 # k/v proj (per q-tile sweep)
                     + 2 * L * L * P * H                  # pair-bias projection
                     + 4 * L * L * D                      # qk^T + pv over all heads
                     + 2 * L * D * D))                    # out proj
    transcendentals = int(B * H * L * L)
    bytes_accessed = int(B * L * L * P * 2 + B * L * D * 4 * (2 + nq)
                         + (4 * D * D + P * H) * 2)

    out_b = pl.pallas_call(
        kernel,
        out_shape=jax.ShapeDtypeStruct((B, L, D), jnp.float32),
        grid_spec=pltpu.PrefetchScalarGridSpec(
            num_scalar_prefetch=0,
            grid=(B, nq, nk),
            in_specs=[
                pl.BlockSpec((1, tq, D), lambda b, qi, ki: (b, qi, 0)),        # x (Q rows)
                pl.BlockSpec((1, tk, D), lambda b, qi, ki: (b, ki, 0)),        # x (K/V rows)
                pl.BlockSpec((1, tq, tk, P), lambda b, qi, ki: (b, qi, ki, 0)),  # pairs bf16
                pl.BlockSpec((D, D), lambda b, qi, ki: (0, 0)),                # wq
                pl.BlockSpec((D, D), lambda b, qi, ki: (0, 0)),                # wk
                pl.BlockSpec((D, D), lambda b, qi, ki: (0, 0)),                # wv
                pl.BlockSpec((D, D), lambda b, qi, ki: (0, 0)),                # wo
                pl.BlockSpec((1, D), lambda b, qi, ki: (0, 0)),                # bo
                pl.BlockSpec((P, H), lambda b, qi, ki: (0, 0)),                # wp
                pl.BlockSpec((1, D), lambda b, qi, ki: (0, 0)),                # ln_q gamma
                pl.BlockSpec((1, D), lambda b, qi, ki: (0, 0)),                # ln_q beta
                pl.BlockSpec((1, P), lambda b, qi, ki: (0, 0)),                # ln_p gamma
                pl.BlockSpec((1, P), lambda b, qi, ki: (0, 0)),                # ln_p beta
            ],
            out_specs=pl.BlockSpec((1, tq, D), lambda b, qi, ki: (b, qi, 0)),
            scratch_shapes=[
                pltpu.VMEM((tq, D), jnp.bfloat16),        # scaled-Q stash
                pltpu.VMEM((H, tq, 1), jnp.float32),      # m (row max)
                pltpu.VMEM((H, tq, 1), jnp.float32),      # l (denominator)
                pltpu.VMEM((H, tq, Dh), jnp.float32),     # acc
            ],
        ),
        compiler_params=pltpu.CompilerParams(
            dimension_semantics=("parallel", "parallel", "arbitrary"),
            vmem_limit_bytes=_vmem_limit_bytes(tq, tk, D, P, H, Dh),
        ),
        cost_estimate=pl.CostEstimate(
            flops=flops, transcendentals=transcendentals,
            bytes_accessed=bytes_accessed),
    )(xb, xb, pairs_b16, wq, wk, wv, wo, bo, wp, gq, bq, gp, bp)

    return jnp.transpose(out_b, (1, 0, 2))                # (L, B, D)


# ----------------------------------------------------------------------------
# Deterministic parameter init (shapes from PairBiasSelfAttention.__init__).
# Weights stored pre-transposed as (Din, Dout) so that y = x @ w.
# NOTE: the reference _reset_parameters zeroes out_proj, which makes the forward
#       output identically zero; we use a non-zero out_proj (and perturbed LN
#       gammas) so the numeric check is meaningful.
# ----------------------------------------------------------------------------
def init_params(key, embed_dim, pairs_dim, num_heads,
                init_scaling=1.0 / math.sqrt(2)):
    D, P, H = embed_dim, pairs_dim, num_heads
    ks = jax.random.split(key, 8)

    def xavier(k, fan_in, fan_out, gain):
        limit = gain * math.sqrt(6.0 / (fan_in + fan_out))
        return jax.random.uniform(k, (fan_in, fan_out), jnp.float32, -limit, limit)

    return {
        "wq": xavier(ks[0], D, D, init_scaling),
        "wk": xavier(ks[1], D, D, init_scaling),
        "wv": xavier(ks[2], D, D, init_scaling),
        "wo": xavier(ks[3], D, D, init_scaling),
        "bo": 0.02 * jax.random.normal(ks[4], (D,), jnp.float32),
        "wp": xavier(ks[5], P, H, init_scaling),          # pairs_proj.weight.T
        "ln_q_g": 1.0 + 0.05 * jax.random.normal(ks[6], (D,), jnp.float32),
        "ln_q_b": jnp.zeros((D,), jnp.float32),
        "ln_p_g": 1.0 + 0.05 * jax.random.normal(ks[7], (P,), jnp.float32),
        "ln_p_b": jnp.zeros((P,), jnp.float32),
    }


# ----------------------------------------------------------------------------
# Pure-JAX f32 reference (mirrors the PyTorch forward, no masks).
# ----------------------------------------------------------------------------
def reference_pair_bias_self_attention(query, pairs, params, num_heads, eps=1e-5):
    L, B, D = query.shape
    H = num_heads
    Dh = D // H

    def ln(x, g, b):
        mu = x.mean(-1, keepdims=True)
        var = ((x - mu) ** 2).mean(-1, keepdims=True)
        return (x - mu) / jnp.sqrt(var + eps) * g + b

    qn = ln(query, params["ln_q_g"], params["ln_q_b"])
    q = (qn @ params["wq"]) * (Dh ** -0.5)
    k = qn @ params["wk"]
    v = qn @ params["wv"]

    q = q.reshape(L, B * H, Dh).transpose(1, 0, 2)
    k = k.reshape(L, B * H, Dh).transpose(1, 0, 2)
    v = v.reshape(L, B * H, Dh).transpose(1, 0, 2)
    s = jnp.einsum("bqd,bkd->bqk", q, k)                  # (B*H, L, L)

    pn = ln(pairs, params["ln_p_g"], params["ln_p_b"])
    pw = jnp.einsum("bqkp,ph->bqkh", pn, params["wp"])    # (B, L, L, H)
    pw = pw.transpose(0, 3, 1, 2)                         # (B, H, L, L)
    s = (s.reshape(B, H, L, L) + pw).reshape(B * H, L, L)

    probs = jax.nn.softmax(s, axis=-1)
    a = jnp.einsum("bqk,bkd->bqd", probs, v)
    a = a.transpose(1, 0, 2).reshape(L, B, D)
    return a @ params["wo"] + params["bo"]


if __name__ == "__main__":
    L, B, D, H, P = 16, 2, 32, 4, 16                      # seq, batch, embed, heads, pairs_dim

    key = jax.random.PRNGKey(0)
    kq, kp, kw = jax.random.split(key, 3)
    query = jax.random.normal(kq, (L, B, D), dtype=jnp.float32)
    pairs = jax.random.normal(kp, (B, L, L, P), dtype=jnp.float32)
    params = init_params(kw, D, P, H)

    # Small tiles so the flash-style online-softmax kv sweep (grid (2, 2, 2)) is
    # actually exercised at these toy shapes; defaults (128) are used for real L.
    out = pair_bias_self_attention(query, pairs, params, H, q_tile=8, kv_tile=8)
    out = jax.block_until_ready(out)

    ref = reference_pair_bias_self_attention(query, pairs, params, H)
    assert out.shape == (L, B, D)
    # bf16 matmul operands + bf16 pairs stream with f32 accumulation -> loosened
    # tolerance vs the f32 reference.
    err = jnp.max(jnp.abs(out - ref))
    assert jnp.allclose(out, ref, atol=4e-2, rtol=4e-2), (
        f"mismatch vs reference, max abs err = {err}"
    )

    print("KERNEL_OK")
</pallas_src>

<mosaic_0001>
module attributes {stable_mosaic.version = 11 : i64} {
  func.func @_pair_bias_attn_kernel(%arg0: i32, %arg1: i32, %arg2: i32, %arg3: memref<1x8x32xf32, #tpu.memory_space<vmem>>, %arg4: memref<1x8x32xf32, #tpu.memory_space<vmem>>, %arg5: memref<1x8x8x16xbf16, #tpu.memory_space<vmem>>, %arg6: memref<32x32xbf16, #tpu.memory_space<vmem>>, %arg7: memref<32x32xbf16, #tpu.memory_space<vmem>>, %arg8: memref<32x32xbf16, #tpu.memory_space<vmem>>, %arg9: memref<32x32xbf16, #tpu.memory_space<vmem>>, %arg10: memref<1x32xf32, #tpu.memory_space<vmem>>, %arg11: memref<16x4xbf16, #tpu.memory_space<vmem>>, %arg12: memref<1x32xf32, #tpu.memory_space<vmem>>, %arg13: memref<1x32xf32, #tpu.memory_space<vmem>>, %arg14: memref<1x16xf32, #tpu.memory_space<vmem>>, %arg15: memref<1x16xf32, #tpu.memory_space<vmem>>, %arg16: memref<1x8x32xf32, #tpu.memory_space<vmem>>, %arg17: memref<8x32xbf16, #tpu.memory_space<vmem>>, %arg18: memref<4x8x1xf32, #tpu.memory_space<vmem>>, %arg19: memref<4x8x1xf32, #tpu.memory_space<vmem>>, %arg20: memref<4x8x8xf32, #tpu.memory_space<vmem>>) attributes {dimension_semantics = [#tpu.dimension_semantics<parallel>, #tpu.dimension_semantics<parallel>, #tpu.dimension_semantics<arbitrary>], iteration_bounds = array<i64: 2, 2, 2>, scalar_prefetch = 0 : i64, scratch_operands = 4 : i64, tpu.core_type = #tpu.core_type<tc>, window_params = [{transform_indices = @transform_0, window_bounds = array<i64: 1, 8, 32>}, {transform_indices = @transform_1, window_bounds = array<i64: 1, 8, 32>}, {transform_indices = @transform_2, window_bounds = array<i64: 1, 8, 8, 16>}, {pipeline_mode = #tpu.pipeline_mode<synchronous>, transform_indices = @transform_3, window_bounds = array<i64: 32, 32>}, {pipeline_mode = #tpu.pipeline_mode<synchronous>, transform_indices = @transform_4, window_bounds = array<i64: 32, 32>}, {pipeline_mode = #tpu.pipeline_mode<synchronous>, transform_indices = @transform_5, window_bounds = array<i64: 32, 32>}, {pipeline_mode = #tpu.pipeline_mode<synchronous>, transform_indices = @transform_6, window_bounds = array<i64: 32, 32>}, {pipeline_mode = #tpu.pipeline_mode<synchronous>, transform_indices = @transform_7, window_bounds = array<i64: 1, 32>}, {pipeline_mode = #tpu.pipeline_mode<synchronous>, transform_indices = @transform_8, window_bounds = array<i64: 16, 4>}, {pipeline_mode = #tpu.pipeline_mode<synchronous>, transform_indices = @transform_9, window_bounds = array<i64: 1, 32>}, {pipeline_mode = #tpu.pipeline_mode<synchronous>, transform_indices = @transform_10, window_bounds = array<i64: 1, 32>}, {pipeline_mode = #tpu.pipeline_mode<synchronous>, transform_indices = @transform_11, window_bounds = array<i64: 1, 16>}, {pipeline_mode = #tpu.pipeline_mode<synchronous>, transform_indices = @transform_12, window_bounds = array<i64: 1, 16>}, {transform_indices = @transform_13, window_bounds = array<i64: 1, 8, 32>}]} {
    %c0_i32 = arith.constant 0 : i32
    %0 = arith.cmpi eq, %arg2, %c0_i32 : i32
    %1 = arith.extui %0 : i1 to i32
    %c0_i32_0 = arith.constant 0 : i32
    %2 = arith.cmpi ne, %1, %c0_i32_0 : i32
    scf.if %2 {
      %c0_124 = arith.constant 0 : index
      %c0_125 = arith.constant 0 : index
      %c0_126 = arith.constant 0 : index
      %225 = vector.load %arg3[%c0_124, %c0_125, %c0_126] : memref<1x8x32xf32, #tpu.memory_space<vmem>>, vector<1x8x32xf32>
      %226 = vector.shape_cast %225 : vector<1x8x32xf32> to vector<8x32xf32>
      %c0_127 = arith.constant 0 : index
      %c0_128 = arith.constant 0 : index
      %227 = vector.load %arg12[%c0_127, %c0_128] : memref<1x32xf32, #tpu.memory_space<vmem>>, vector<1x32xf32>
      %c0_129 = arith.constant 0 : index
      %c0_130 = arith.constant 0 : index
      %228 = vector.load %arg13[%c0_129, %c0_130] : memref<1x32xf32, #tpu.memory_space<vmem>>, vector<1x32xf32>
      %cst_131 = arith.constant dense<0.000000e+00> : vector<8xf32>
      %229 = vector.multi_reduction <add>, %226, %cst_131 [1] : vector<8x32xf32> to vector<8xf32>
      %230 = vector.shape_cast %229 : vector<8xf32> to vector<8x1xf32>
      %cst_132 = arith.constant 3.200000e+01 : f32
      %231 = vector.broadcast %cst_132 : f32 to vector<8x1xf32>
      %232 = arith.divf %230, %231 : vector<8x1xf32>
      %233 = vector.broadcast %232 : vector<8x1xf32> to vector<8x32xf32>
      %234 = arith.subf %226, %233 : vector<8x32xf32>
      %235 = arith.mulf %234, %234 : vector<8x32xf32>
      %cst_133 = arith.constant dense<0.000000e+00> : vector<8xf32>
      %236 = vector.multi_reduction <add>, %235, %cst_133 [1] : vector<8x32xf32> to vector<8xf32>
      %237 = vector.shape_cast %236 : vector<8xf32> to vector<8x1xf32>
      %cst_134 = arith.constant 3.200000e+01 : f32
      %238 = vector.broadcast %cst_134 : f32 to vector<8x1xf32>
      %239 = arith.divf %237, %238 : vector<8x1xf32>
      %cst_135 = arith.constant 9.99999974E-6 : f32
      %240 = vector.broadcast %cst_135 : f32 to vector<8x1xf32>
      %241 = arith.addf %239, %240 : vector<8x1xf32>
      %242 = math.rsqrt %241 : vector<8x1xf32>
      %243 = vector.broadcast %242 : vector<8x1xf32> to vector<8x32xf32>
      %244 = arith.mulf %234, %243 : vector<8x32xf32>
      %245 = vector.broadcast %227 : vector<1x32xf32> to vector<8x32xf32>
      %246 = arith.mulf %244, %245 : vector<8x32xf32>
      %247 = vector.broadcast %228 : vector<1x32xf32> to vector<8x32xf32>
      %248 = arith.addf %246, %247 : vector<8x32xf32>
      %249 = arith.truncf %248 : vector<8x32xf32> to vector<8x32xbf16>
      %c0_136 = arith.constant 0 : index
      %c0_137 = arith.constant 0 : index
      %250 = vector.load %arg6[%c0_136, %c0_137] : memref<32x32xbf16, #tpu.memory_space<vmem>>, vector<32x32xbf16>
      %cst_138 = arith.constant dense<0.000000e+00> : vector<8x32xf32>
      %251 = tpu.matmul %249, %250, %cst_138 {dimension_numbers = #tpu.dot_dimension_numbers<[1], [0], [0], [1], [0, 0, 1, 1], [], []>} : vector<8x32xbf16>, vector<32x32xbf16>, vector<8x32xf32> -> vector<8x32xf32>
      %252 = arith.truncf %251 : vector<8x32xf32> to vector<8x32xbf16>
      %c0_139 = arith.constant 0 : index
      %c0_140 = arith.constant 0 : index
      %253 = vector.load %arg17[%c0_139, %c0_140] : memref<8x32xbf16, #tpu.memory_space<vmem>>, vector<8x32xbf16>
      tpu.vector_store %arg17[%c0_139, %c0_140], %252 {strides = array<i32>} : memref<8x32xbf16, #tpu.memory_space<vmem>>, vector<8x32xbf16>,
      %cst_141 = arith.constant 0xFF800000 : f32
      %254 = vector.broadcast %cst_141 : f32 to vector<4x8x1xf32>
      %c0_142 = arith.constant 0 : index
      %c0_143 = arith.constant 0 : index
      %c0_144 = arith.constant 0 : index
      %255 = vector.load %arg18[%c0_142, %c0_143, %c0_144] : memref<4x8x1xf32, #tpu.memory_space<vmem>>, vector<4x8x1xf32>
      tpu.vector_store %arg18[%c0_142, %c0_143, %c0_144], %254 {strides = array<i32>} : memref<4x8x1xf32, #tpu.memory_space<vmem>>, vector<4x8x1xf32>,
      %cst_145 = arith.constant 0.000000e+00 : f32
      %256 = vector.broadcast %cst_145 : f32 to vector<4x8x1xf32>
      %c0_146 = arith.constant 0 : index
      %c0_147 = arith.constant 0 : index
      %c0_148 = arith.constant 0 : index
      %257 = vector.load %arg19[%c0_146, %c0_147, %c0_148] : memref<4x8x1xf32, #tpu.memory_space<vmem>>, vector<4x8x1xf32>
      tpu.vector_store %arg19[%c0_146, %c0_147, %c0_148], %256 {strides = array<i32>} : memref<4x8x1xf32, #tpu.memory_space<vmem>>, vector<4x8x1xf32>,
      %cst_149 = arith.constant 0.000000e+00 : f32
      %258 = vector.broadcast %cst_149 : f32 to vector<4x8x8xf32>
      %c0_150 = arith.constant 0 : index
      %c0_151 = arith.constant 0 : index
      %c0_152 = arith.constant 0 : index
      %259 = vector.load %arg20[%c0_150, %c0_151, %c0_152] : memref<4x8x8xf32, #tpu.memory_space<vmem>>, vector<4x8x8xf32>
      tpu.vector_store %arg20[%c0_150, %c0_151, %c0_152], %258 {strides = array<i32>} : memref<4x8x8xf32, #tpu.memory_space<vmem>>, vector<4x8x8xf32>,
    } else {
    }
    %c0 = arith.constant 0 : index
    %c0_1 = arith.constant 0 : index
    %c0_2 = arith.constant 0 : index
    %3 = vector.load %arg4[%c0, %c0_1, %c0_2] : memref<1x8x32xf32, #tpu.memory_space<vmem>>, vector<1x8x32xf32>
    %4 = vector.shape_cast %3 : vector<1x8x32xf32> to vector<8x32xf32>
    %c0_3 = arith.constant 0 : index
    %c0_4 = arith.constant 0 : index
    %5 = vector.load %arg12[%c0_3, %c0_4] : memref<1x32xf32, #tpu.memory_space<vmem>>, vector<1x32xf32>
    %c0_5 = arith.constant 0 : index
    %c0_6 = arith.constant 0 : index
    %6 = vector.load %arg13[%c0_5, %c0_6] : memref<1x32xf32, #tpu.memory_space<vmem>>, vector<1x32xf32>
    %cst = arith.constant dense<0.000000e+00> : vector<8xf32>
    %7 = vector.multi_reduction <add>, %4, %cst [1] : vector<8x32xf32> to vector<8xf32>
    %8 = vector.shape_cast %7 : vector<8xf32> to vector<8x1xf32>
    %cst_7 = arith.constant 3.200000e+01 : f32
    %9 = vector.broadcast %cst_7 : f32 to vector<8x1xf32>
    %10 = arith.divf %8, %9 : vector<8x1xf32>
    %11 = vector.broadcast %10 : vector<8x1xf32> to vector<8x32xf32>
    %12 = arith.subf %4, %11 : vector<8x32xf32>
    %13 = arith.mulf %12, %12 : vector<8x32xf32>
    %cst_8 = arith.constant dense<0.000000e+00> : vector<8xf32>
    %14 = vector.multi_reduction <add>, %13, %cst_8 [1] : vector<8x32xf32> to vector<8xf32>
    %15 = vector.shape_cast %14 : vector<8xf32> to vector<8x1xf32>
    %cst_9 = arith.constant 3.200000e+01 : f32
    %16 = vector.broadcast %cst_9 : f32 to vector<8x1xf32>
    %17 = arith.divf %15, %16 : vector<8x1xf32>
    %cst_10 = arith.constant 9.99999974E-6 : f32
    %18 = vector.broadcast %cst_10 : f32 to vector<8x1xf32>
    %19 = arith.addf %17, %18 : vector<8x1xf32>
    %20 = math.rsqrt %19 : vector<8x1xf32>
    %21 = vector.broadcast %20 : vector<8x1xf32> to vector<8x32xf32>
    %22 = arith.mulf %12, %21 : vector<8x32xf32>
    %23 = vector.broadcast %5 : vector<1x32xf32> to vector<8x32xf32>
    %24 = arith.mulf %22, %23 : vector<8x32xf32>
    %25 = vector.broadcast %6 : vector<1x32xf32> to vector<8x32xf32>
    %26 = arith.addf %24, %25 : vector<8x32xf32>
    %27 = arith.truncf %26 : vector<8x32xf32> to vector<8x32xbf16>
    %c0_11 = arith.constant 0 : index
    %c0_12 = arith.constant 0 : index
    %28 = vector.load %arg7[%c0_11, %c0_12] : memref<32x32xbf16, #tpu.memory_space<vmem>>, vector<32x32xbf16>
    %cst_13 = arith.constant dense<0.000000e+00> : vector<8x32xf32>
    %29 = tpu.matmul %27, %28, %cst_13 {dimension_numbers = #tpu.dot_dimension_numbers<[1], [0], [0], [1], [0, 0, 1, 1], [], []>} : vector<8x32xbf16>, vector<32x32xbf16>, vector<8x32xf32> -> vector<8x32xf32>
    %30 = arith.truncf %29 : vector<8x32xf32> to vector<8x32xbf16>
    %c0_14 = arith.constant 0 : index
    %c0_15 = arith.constant 0 : index
    %31 = vector.load %arg8[%c0_14, %c0_15] : memref<32x32xbf16, #tpu.memory_space<vmem>>, vector<32x32xbf16>
    %cst_16 = arith.constant dense<0.000000e+00> : vector<8x32xf32>
    %32 = tpu.matmul %27, %31, %cst_16 {dimension_numbers = #tpu.dot_dimension_numbers<[1], [0], [0], [1], [0, 0, 1, 1], [], []>} : vector<8x32xbf16>, vector<32x32xbf16>, vector<8x32xf32> -> vector<8x32xf32>
    %33 = arith.truncf %32 : vector<8x32xf32> to vector<8x32xbf16>
    %c0_17 = arith.constant 0 : index
    %c0_18 = arith.constant 0 : index
    %c0_19 = arith.constant 0 : index
    %c0_20 = arith.constant 0 : index
    %34 = vector.load %arg5[%c0_17, %c0_18, %c0_19, %c0_20] : memref<1x8x8x16xbf16, #tpu.memory_space<vmem>>, vector<1x8x8x16xbf16>
    %35 = vector.shape_cast %34 : vector<1x8x8x16xbf16> to vector<8x8x16xbf16>
    %36 = arith.extf %35 : vector<8x8x16xbf16> to vector<8x8x16xf32>
    %c0_21 = arith.constant 0 : index
    %c0_22 = arith.constant 0 : index
    %37 = vector.load %arg14[%c0_21, %c0_22] : memref<1x16xf32, #tpu.memory_space<vmem>>, vector<1x16xf32>
    %c0_23 = arith.constant 0 : index
    %c0_24 = arith.constant 0 : index
    %38 = vector.load %arg15[%c0_23, %c0_24] : memref<1x16xf32, #tpu.memory_space<vmem>>, vector<1x16xf32>
    %cst_25 = arith.constant dense<0.000000e+00> : vector<8x8xf32>
    %39 = vector.multi_reduction <add>, %36, %cst_25 [2] : vector<8x8x16xf32> to vector<8x8xf32>
    %40 = vector.shape_cast %39 : vector<8x8xf32> to vector<8x8x1xf32>
    %cst_26 = arith.constant 1.600000e+01 : f32
    %41 = vector.broadcast %cst_26 : f32 to vector<8x8x1xf32>
    %42 = arith.divf %40, %41 : vector<8x8x1xf32>
    %43 = vector.broadcast %42 : vector<8x8x1xf32> to vector<8x8x16xf32>
    %44 = arith.subf %36, %43 : vector<8x8x16xf32>
    %45 = arith.mulf %44, %44 : vector<8x8x16xf32>
    %cst_27 = arith.constant dense<0.000000e+00> : vector<8x8xf32>
    %46 = vector.multi_reduction <add>, %45, %cst_27 [2] : vector<8x8x16xf32> to vector<8x8xf32>
    %47 = vector.shape_cast %46 : vector<8x8xf32> to vector<8x8x1xf32>
    %cst_28 = arith.constant 1.600000e+01 : f32
    %48 = vector.broadcast %cst_28 : f32 to vector<8x8x1xf32>
    %49 = arith.divf %47, %48 : vector<8x8x1xf32>
    %cst_29 = arith.constant 9.99999974E-6 : f32
    %50 = vector.broadcast %cst_29 : f32 to vector<8x8x1xf32>
    %51 = arith.addf %49, %50 : vector<8x8x1xf32>
    %52 = math.rsqrt %51 : vector<8x8x1xf32>
    %53 = vector.broadcast %52 : vector<8x8x1xf32> to vector<8x8x16xf32>
    %54 = arith.mulf %44, %53 : vector<8x8x16xf32>
    %55 = vector.shape_cast %37 : vector<1x16xf32> to vector<1x1x16xf32>
    %56 = vector.broadcast %55 : vector<1x1x16xf32> to vector<8x8x16xf32>
    %57 = arith.mulf %54, %56 : vector<8x8x16xf32>
    %58 = vector.shape_cast %38 : vector<1x16xf32> to vector<1x1x16xf32>
    %59 = vector.broadcast %58 : vector<1x1x16xf32> to vector<8x8x16xf32>
    %60 = arith.addf %57, %59 : vector<8x8x16xf32>
    %61 = vector.shape_cast %60 : vector<8x8x16xf32> to vector<64x16xf32>
    %62 = arith.truncf %61 : vector<64x16xf32> to vector<64x16xbf16>
    %c0_30 = arith.constant 0 : index
    %c0_31 = arith.constant 0 : index
    %63 = vector.load %arg11[%c0_30, %c0_31] : memref<16x4xbf16, #tpu.memory_space<vmem>>, vector<16x4xbf16>
    %cst_32 = arith.constant dense<0.000000e+00> : vector<64x4xf32>
    %64 = tpu.matmul %62, %63, %cst_32 {dimension_numbers = #tpu.dot_dimension_numbers<[1], [0], [0], [1], [0, 0, 1, 1], [], []>} : vector<64x16xbf16>, vector<16x4xbf16>, vector<64x4xf32> -> vector<64x4xf32>
    %65 = vector.shape_cast %64 : vector<64x4xf32> to vector<8x8x4xf32>
    %c0_33 = arith.constant 0 : index
    %c0_34 = arith.constant 0 : index
    %66 = vector.load %arg17[%c0_33, %c0_34] : memref<8x32xbf16, #tpu.memory_space<vmem>>, vector<8x8xbf16>
    %67 = vector.extract_strided_slice %30 {offsets = [0, 0], sizes = [8, 8], strides = [1, 1]} : vector<8x32xbf16> to vector<8x8xbf16>
    %68 = vector.extract_strided_slice %33 {offsets = [0, 0], sizes = [8, 8], strides = [1, 1]} : vector<8x32xbf16> to vector<8x8xbf16>
    %cst_35 = arith.constant dense<0.000000e+00> : vector<8x8xf32>
    %69 = tpu.matmul %66, %67, %cst_35 {dimension_numbers = #tpu.dot_dimension_numbers<[1], [1], [0], [0], [0, 0, 1, 0], [], []>} : vector<8x8xbf16>, vector<8x8xbf16>, vector<8x8xf32> -> vector<8x8xf32>
    %70 = vector.extract_strided_slice %65 {offsets = [0, 0, 0], sizes = [8, 8, 1], strides = [1, 1, 1]} : vector<8x8x4xf32> to vector<8x8x1xf32>
    %71 = vector.shape_cast %70 : vector<8x8x1xf32> to vector<8x8xf32>
    %72 = arith.addf %69, %71 : vector<8x8xf32>
    %c0_36 = arith.constant 0 : index
    %c0_37 = arith.constant 0 : index
    %c0_38 = arith.constant 0 : index
    %73 = vector.load %arg18[%c0_36, %c0_37, %c0_38] : memref<4x8x1xf32, #tpu.memory_space<vmem>>, vector<1x8x1xf32>
    %74 = vector.shape_cast %73 : vector<1x8x1xf32> to vector<8x1xf32>
    %cst_39 = arith.constant dense<0xFF800000> : vector<8xf32>
    %75 = vector.multi_reduction <maximumf>, %72, %cst_39 [1] : vector<8x8xf32> to vector<8xf32>
    %76 = vector.shape_cast %75 : vector<8xf32> to vector<8x1xf32>
    %77 = arith.maximumf %74, %76 : vector<8x1xf32>
    %78 = arith.subf %74, %77 : vector<8x1xf32>
    %79 = math.exp %78 : vector<8x1xf32>
    %80 = vector.broadcast %77 : vector<8x1xf32> to vector<8x8xf32>
    %81 = arith.subf %72, %80 : vector<8x8xf32>
    %82 = math.exp %81 : vector<8x8xf32>
    %c0_40 = arith.constant 0 : index
    %c0_41 = arith.constant 0 : index
    %c0_42 = arith.constant 0 : index
    %83 = vector.load %arg19[%c0_40, %c0_41, %c0_42] : memref<4x8x1xf32, #tpu.memory_space<vmem>>, vector<1x8x1xf32>
    %84 = vector.shape_cast %83 : vector<1x8x1xf32> to vector<8x1xf32>
    %85 = arith.mulf %79, %84 : vector<8x1xf32>
    %cst_43 = arith.constant dense<0.000000e+00> : vector<8xf32>
    %86 = vector.multi_reduction <add>, %82, %cst_43 [1] : vector<8x8xf32> to vector<8xf32>
    %87 = vector.shape_cast %86 : vector<8xf32> to vector<8x1xf32>
    %88 = arith.addf %85, %87 : vector<8x1xf32>
    %c0_44 = arith.constant 0 : index
    %c0_45 = arith.constant 0 : index
    %c0_46 = arith.constant 0 : index
    %89 = vector.load %arg19[%c0_44, %c0_45, %c0_46] : memref<4x8x1xf32, #tpu.memory_space<vmem>>, vector<1x8x1xf32>
    %90 = vector.shape_cast %89 : vector<1x8x1xf32> to vector<8x1xf32>
    %91 = vector.shape_cast %88 : vector<8x1xf32> to vector<1x8x1xf32>
    tpu.vector_store %arg19[%c0_44, %c0_45, %c0_46], %91 {strides = array<i32>} : memref<4x8x1xf32, #tpu.memory_space<vmem>>, vector<1x8x1xf32>,
    %c0_47 = arith.constant 0 : index
    %c0_48 = arith.constant 0 : index
    %c0_49 = arith.constant 0 : index
    %92 = vector.load %arg20[%c0_47, %c0_48, %c0_49] : memref<4x8x8xf32, #tpu.memory_space<vmem>>, vector<1x8x8xf32>
    %93 = vector.shape_cast %92 : vector<1x8x8xf32> to vector<8x8xf32>
    %94 = vector.broadcast %79 : vector<8x1xf32> to vector<8x8xf32>
    %95 = arith.mulf %94, %93 : vector<8x8xf32>
    %96 = arith.truncf %82 : vector<8x8xf32> to vector<8x8xbf16>
    %cst_50 = arith.constant dense<0.000000e+00> : vector<8x8xf32>
    %97 = tpu.matmul %96, %68, %cst_50 {dimension_numbers = #tpu.dot_dimension_numbers<[1], [0], [0], [1], [0, 0, 1, 1], [], []>} : vector<8x8xbf16>, vector<8x8xbf16>, vector<8x8xf32> -> vector<8x8xf32>
    %98 = arith.addf %95, %97 : vector<8x8xf32>
    %c0_51 = arith.constant 0 : index
    %c0_52 = arith.constant 0 : index
    %c0_53 = arith.constant 0 : index
    %99 = vector.load %arg20[%c0_51, %c0_52, %c0_53] : memref<4x8x8xf32, #tpu.memory_space<vmem>>, vector<1x8x8xf32>
    %100 = vector.shape_cast %99 : vector<1x8x8xf32> to vector<8x8xf32>
    %101 = vector.shape_cast %98 : vector<8x8xf32> to vector<1x8x8xf32>
    tpu.vector_store %arg20[%c0_51, %c0_52, %c0_53], %101 {strides = array<i32>} : memref<4x8x8xf32, #tpu.memory_space<vmem>>, vector<1x8x8xf32>,
    %c0_54 = arith.constant 0 : index
    %c0_55 = arith.constant 0 : index
    %c0_56 = arith.constant 0 : index
    %102 = vector.load %arg18[%c0_54, %c0_55, %c0_56] : memref<4x8x1xf32, #tpu.memory_space<vmem>>, vector<1x8x1xf32>
    %103 = vector.shape_cast %102 : vector<1x8x1xf32> to vector<8x1xf32>
    %104 = vector.shape_cast %77 : vector<8x1xf32> to vector<1x8x1xf32>
    tpu.vector_store %arg18[%c0_54, %c0_55, %c0_56], %104 {strides = array<i32>} : memref<4x8x1xf32, #tpu.memory_space<vmem>>, vector<1x8x1xf32>,
    %c0_57 = arith.constant 0 : index
    %c8 = arith.constant 8 : index
    %105 = vector.load %arg17[%c0_57, %c8] : memref<8x32xbf16, #tpu.memory_space<vmem>>, vector<8x8xbf16>
    %106 = vector.extract_strided_slice %30 {offsets = [0, 8], sizes = [8, 8], strides = [1, 1]} : vector<8x32xbf16> to vector<8x8xbf16>
    %107 = vector.extract_strided_slice %33 {offsets = [0, 8], sizes = [8, 8], strides = [1, 1]} : vector<8x32xbf16> to vector<8x8xbf16>
    %cst_58 = arith.constant dense<0.000000e+00> : vector<8x8xf32>
    %108 = tpu.matmul %105, %106, %cst_58 {dimension_numbers = #tpu.dot_dimension_numbers<[1], [1], [0], [0], [0, 0, 1, 0], [], []>} : vector<8x8xbf16>, vector<8x8xbf16>, vector<8x8xf32> -> vector<8x8xf32>
    %109 = vector.extract_strided_slice %65 {offsets = [0, 0, 1], sizes = [8, 8, 1], strides = [1, 1, 1]} : vector<8x8x4xf32> to vector<8x8x1xf32>
    %110 = vector.shape_cast %109 : vector<8x8x1xf32> to vector<8x8xf32>
    %111 = arith.addf %108, %110 : vector<8x8xf32>
    %c1 = arith.constant 1 : index
    %c0_59 = arith.constant 0 : index
    %c0_60 = arith.constant 0 : index
    %112 = vector.load %arg18[%c1, %c0_59, %c0_60] : memref<4x8x1xf32, #tpu.memory_space<vmem>>, vector<1x8x1xf32>
    %113 = vector.shape_cast %112 : vector<1x8x1xf32> to vector<8x1xf32>
    %cst_61 = arith.constant dense<0xFF800000> : vector<8xf32>
    %114 = vector.multi_reduction <maximumf>, %111, %cst_61 [1] : vector<8x8xf32> to vector<8xf32>
    %115 = vector.shape_cast %114 : vector<8xf32> to vector<8x1xf32>
    %116 = arith.maximumf %113, %115 : vector<8x1xf32>
    %117 = arith.subf %113, %116 : vector<8x1xf32>
    %118 = math.exp %117 : vector<8x1xf32>
    %119 = vector.broadcast %116 : vector<8x1xf32> to vector<8x8xf32>
    %120 = arith.subf %111, %119 : vector<8x8xf32>
    %121 = math.exp %120 : vector<8x8xf32>
    %c1_62 = arith.constant 1 : index
    %c0_63 = arith.constant 0 : index
    %c0_64 = arith.constant 0 : index
    %122 = vector.load %arg19[%c1_62, %c0_63, %c0_64] : memref<4x8x1xf32, #tpu.memory_space<vmem>>, vector<1x8x1xf32>
    %123 = vector.shape_cast %122 : vector<1x8x1xf32> to vector<8x1xf32>
    %124 = arith.mulf %118, %123 : vector<8x1xf32>
    %cst_65 = arith.constant dense<0.000000e+00> : vector<8xf32>
    %125 = vector.multi_reduction <add>, %121, %cst_65 [1] : vector<8x8xf32> to vector<8xf32>
    %126 = vector.shape_cast %125 : vector<8xf32> to vector<8x1xf32>
    %127 = arith.addf %124, %126 : vector<8x1xf32>
    %c1_66 = arith.constant 1 : index
    %c0_67 = arith.constant 0 : index
    %c0_68 = arith.constant 0 : index
    %128 = vector.load %arg19[%c1_66, %c0_67, %c0_68] : memref<4x8x1xf32, #tpu.memory_space<vmem>>, vector<1x8x1xf32>
    %129 = vector.shape_cast %128 : vector<1x8x1xf32> to vector<8x1xf32>
    %130 = vector.shape_cast %127 : vector<8x1xf32> to vector<1x8x1xf32>
    tpu.vector_store %arg19[%c1_66, %c0_67, %c0_68], %130 {strides = array<i32>} : memref<4x8x1xf32, #tpu.memory_space<vmem>>, vector<1x8x1xf32>,
    %c1_69 = arith.constant 1 : index
    %c0_70 = arith.constant 0 : index
    %c0_71 = arith.constant 0 : index
    %131 = vector.load %arg20[%c1_69, %c0_70, %c0_71] : memref<4x8x8xf32, #tpu.memory_space<vmem>>, vector<1x8x8xf32>
    %132 = vector.shape_cast %131 : vector<1x8x8xf32> to vector<8x8xf32>
    %133 = vector.broadcast %118 : vector<8x1xf32> to vector<8x8xf32>
    %134 = arith.mulf %133, %132 : vector<8x8xf32>
    %135 = arith.truncf %121 : vector<8x8xf32> to vector<8x8xbf16>
    %cst_72 = arith.constant dense<0.000000e+00> : vector<8x8xf32>
    %136 = tpu.matmul %135, %107, %cst_72 {dimension_numbers = #tpu.dot_dimension_numbers<[1], [0], [0], [1], [0, 0, 1, 1], [], []>} : vector<8x8xbf16>, vector<8x8xbf16>, vector<8x8xf32> -> vector<8x8xf32>
    %137 = arith.addf %134, %136 : vector<8x8xf32>
    %c1_73 = arith.constant 1 : index
    %c0_74 = arith.constant 0 : index
    %c0_75 = arith.constant 0 : index
    %138 = vector.load %arg20[%c1_73, %c0_74, %c0_75] : memref<4x8x8xf32, #tpu.memory_space<vmem>>, vector<1x8x8xf32>
    %139 = vector.shape_cast %138 : vector<1x8x8xf32> to vector<8x8xf32>
    %140 = vector.shape_cast %137 : vector<8x8xf32> to vector<1x8x8xf32>
    tpu.vector_store %arg20[%c1_73, %c0_74, %c0_75], %140 {strides = array<i32>} : memref<4x8x8xf32, #tpu.memory_space<vmem>>, vector<1x8x8xf32>,
    %c1_76 = arith.constant 1 : index
    %c0_77 = arith.constant 0 : index
    %c0_78 = arith.constant 0 : index
    %141 = vector.load %arg18[%c1_76, %c0_77, %c0_78] : memref<4x8x1xf32, #tpu.memory_space<vmem>>, vector<1x8x1xf32>
    %142 = vector.shape_cast %141 : vector<1x8x1xf32> to vector<8x1xf32>
    %143 = vector.shape_cast %116 : vector<8x1xf32> to vector<1x8x1xf32>
    tpu.vector_store %arg18[%c1_76, %c0_77, %c0_78], %143 {strides = array<i32>} : memref<4x8x1xf32, #tpu.memory_space<vmem>>, vector<1x8x1xf32>,
    %c0_79 = arith.constant 0 : index
    %c16 = arith.constant 16 : index
    %144 = vector.load %arg17[%c0_79, %c16] : memref<8x32xbf16, #tpu.memory_space<vmem>>, vector<8x8xbf16>
    %145 = vector.extract_strided_slice %30 {offsets = [0, 16], sizes = [8, 8], strides = [1, 1]} : vector<8x32xbf16> to vector<8x8xbf16>
    %146 = vector.extract_strided_slice %33 {offsets = [0, 16], sizes = [8, 8], strides = [1, 1]} : vector<8x32xbf16> to vector<8x8xbf16>
    %cst_80 = arith.constant dense<0.000000e+00> : vector<8x8xf32>
    %147 = tpu.matmul %144, %145, %cst_80 {dimension_numbers = #tpu.dot_dimension_numbers<[1], [1], [0], [0], [0, 0, 1, 0], [], []>} : vector<8x8xbf16>, vector<8x8xbf16>, vector<8x8xf32> -> vector<8x8xf32>
    %148 = vector.extract_strided_slice %65 {offsets = [0, 0, 2], sizes = [8, 8, 1], strides = [1, 1, 1]} : vector<8x8x4xf32> to vector<8x8x1xf32>
    %149 = vector.shape_cast %148 : vector<8x8x1xf32> to vector<8x8xf32>
    %150 = arith.addf %147, %149 : vector<8x8xf32>
    %c2 = arith.constant 2 : index
    %c0_81 = arith.constant 0 : index
    %c0_82 = arith.constant 0 : index
    %151 = vector.load %arg18[%c2, %c0_81, %c0_82] : memref<4x8x1xf32, #tpu.memory_space<vmem>>, vector<1x8x1xf32>
    %152 = vector.shape_cast %151 : vector<1x8x1xf32> to vector<8x1xf32>
    %cst_83 = arith.constant dense<0xFF800000> : vector<8xf32>
    %153 = vector.multi_reduction <maximumf>, %150, %cst_83 [1] : vector<8x8xf32> to vector<8xf32>
    %154 = vector.shape_cast %153 : vector<8xf32> to vector<8x1xf32>
    %155 = arith.maximumf %152, %154 : vector<8x1xf32>
    %156 = arith.subf %152, %155 : vector<8x1xf32>
    %157 = math.exp %156 : vector<8x1xf32>
    %158 = vector.broadcast %155 : vector<8x1xf32> to vector<8x8xf32>
    %159 = arith.subf %150, %158 : vector<8x8xf32>
    %160 = math.exp %159 : vector<8x8xf32>
    %c2_84 = arith.constant 2 : index
    %c0_85 = arith.constant 0 : index
    %c0_86 = arith.constant 0 : index
    %161 = vector.load %arg19[%c2_84, %c0_85, %c0_86] : memref<4x8x1xf32, #tpu.memory_space<vmem>>, vector<1x8x1xf32>
    %162 = vector.shape_cast %161 : vector<1x8x1xf32> to vector<8x1xf32>
    %163 = arith.mulf %157, %162 : vector<8x1xf32>
    %cst_87 = arith.constant dense<0.000000e+00> : vector<8xf32>
    %164 = vector.multi_reduction <add>, %160, %cst_87 [1] : vector<8x8xf32> to vector<8xf32>
    %165 = vector.shape_cast %164 : vector<8xf32> to vector<8x1xf32>
    %166 = arith.addf %163, %165 : vector<8x1xf32>
    %c2_88 = arith.constant 2 : index
    %c0_89 = arith.constant 0 : index
    %c0_90 = arith.constant 0 : index
    %167 = vector.load %arg19[%c2_88, %c0_89, %c0_90] : memref<4x8x1xf32, #tpu.memory_space<vmem>>, vector<1x8x1xf32>
    %168 = vector.shape_cast %167 : vector<1x8x1xf32> to vector<8x1xf32>
    %169 = vector.shape_cast %166 : vector<8x1xf32> to vector<1x8x1xf32>
    tpu.vector_store %arg19[%c2_88, %c0_89, %c0_90], %169 {strides = array<i32>} : memref<4x8x1xf32, #tpu.memory_space<vmem>>, vector<1x8x1xf32>,
    %c2_91 = arith.constant 2 : index
    %c0_92 = arith.constant 0 : index
    %c0_93 = arith.constant 0 : index
    %170 = vector.load %arg20[%c2_91, %c0_92, %c0_93] : memref<4x8x8xf32, #tpu.memory_space<vmem>>, vector<1x8x8xf32>
    %171 = vector.shape_cast %170 : vector<1x8x8xf32> to vector<8x8xf32>
    %172 = vector.broadcast %157 : vector<8x1xf32> to vector<8x8xf32>
    %173 = arith.mulf %172, %171 : vector<8x8xf32>
    %174 = arith.truncf %160 : vector<8x8xf32> to vector<8x8xbf16>
    %cst_94 = arith.constant dense<0.000000e+00> : vector<8x8xf32>
    %175 = tpu.matmul %174, %146, %cst_94 {dimension_numbers = #tpu.dot_dimension_numbers<[1], [0], [0], [1], [0, 0, 1, 1], [], []>} : vector<8x8xbf16>, vector<8x8xbf16>, vector<8x8xf32> -> vector<8x8xf32>
    %176 = arith.addf %173, %175 : vector<8x8xf32>
    %c2_95 = arith.constant 2 : index
    %c0_96 = arith.constant 0 : index
    %c0_97 = arith.constant 0 : index
    %177 = vector.load %arg20[%c2_95, %c0_96, %c0_97] : memref<4x8x8xf32, #tpu.memory_space<vmem>>, vector<1x8x8xf32>
    %178 = vector.shape_cast %177 : vector<1x8x8xf32> to vector<8x8xf32>
    %179 = vector.shape_cast %176 : vector<8x8xf32> to vector<1x8x8xf32>
    tpu.vector_store %arg20[%c2_95, %c0_96, %c0_97], %179 {strides = array<i32>} : memref<4x8x8xf32, #tpu.memory_space<vmem>>, vector<1x8x8xf32>,
    %c2_98 = arith.constant 2 : index
    %c0_99 = arith.constant 0 : index
    %c0_100 = arith.constant 0 : index
    %180 = vector.load %arg18[%c2_98, %c0_99, %c0_100] : memref<4x8x1xf32, #tpu.memory_space<vmem>>, vector<1x8x1xf32>
    %181 = vector.shape_cast %180 : vector<1x8x1xf32> to vector<8x1xf32>
    %182 = vector.shape_cast %155 : vector<8x1xf32> to vector<1x8x1xf32>
    tpu.vector_store %arg18[%c2_98, %c0_99, %c0_100], %182 {strides = array<i32>} : memref<4x8x1xf32, #tpu.memory_space<vmem>>, vector<1x8x1xf32>,
    %c0_101 = arith.constant 0 : index
    %c24 = arith.constant 24 : index
    %183 = vector.load %arg17[%c0_101, %c24] : memref<8x32xbf16, #tpu.memory_space<vmem>>, vector<8x8xbf16>
    %184 = vector.extract_strided_slice %30 {offsets = [0, 24], sizes = [8, 8], strides = [1, 1]} : vector<8x32xbf16> to vector<8x8xbf16>
    %185 = vector.extract_strided_slice %33 {offsets = [0, 24], sizes = [8, 8], strides = [1, 1]} : vector<8x32xbf16> to vector<8x8xbf16>
    %cst_102 = arith.constant dense<0.000000e+00> : vector<8x8xf32>
    %186 = tpu.matmul %183, %184, %cst_102 {dimension_numbers = #tpu.dot_dimension_numbers<[1], [1], [0], [0], [0, 0, 1, 0], [], []>} : vector<8x8xbf16>, vector<8x8xbf16>, vector<8x8xf32> -> vector<8x8xf32>
    %187 = vector.extract_strided_slice %65 {offsets = [0, 0, 3], sizes = [8, 8, 1], strides = [1, 1, 1]} : vector<8x8x4xf32> to vector<8x8x1xf32>
    %188 = vector.shape_cast %187 : vector<8x8x1xf32> to vector<8x8xf32>
    %189 = arith.addf %186, %188 : vector<8x8xf32>
    %c3 = arith.constant 3 : index
    %c0_103 = arith.constant 0 : index
    %c0_104 = arith.constant 0 : index
    %190 = vector.load %arg18[%c3, %c0_103, %c0_104] : memref<4x8x1xf32, #tpu.memory_space<vmem>>, vector<1x8x1xf32>
    %191 = vector.shape_cast %190 : vector<1x8x1xf32> to vector<8x1xf32>
    %cst_105 = arith.constant dense<0xFF800000> : vector<8xf32>
    %192 = vector.multi_reduction <maximumf>, %189, %cst_105 [1] : vector<8x8xf32> to vector<8xf32>
    %193 = vector.shape_cast %192 : vector<8xf32> to vector<8x1xf32>
    %194 = arith.maximumf %191, %193 : vector<8x1xf32>
    %195 = arith.subf %191, %194 : vector<8x1xf32>
    %196 = math.exp %195 : vector<8x1xf32>
    %197 = vector.broadcast %194 : vector<8x1xf32> to vector<8x8xf32>
    %198 = arith.subf %189, %197 : vector<8x8xf32>
    %199 = math.exp %198 : vector<8x8xf32>
    %c3_106 = arith.constant 3 : index
    %c0_107 = arith.constant 0 : index
    %c0_108 = arith.constant 0 : index
    %200 = vector.load %arg19[%c3_106, %c0_107, %c0_108] : memref<4x8x1xf32, #tpu.memory_space<vmem>>, vector<1x8x1xf32>
    %201 = vector.shape_cast %200 : vector<1x8x1xf32> to vector<8x1xf32>
    %202 = arith.mulf %196, %201 : vector<8x1xf32>
    %cst_109 = arith.constant dense<0.000000e+00> : vector<8xf32>
    %203 = vector.multi_reduction <add>, %199, %cst_109 [1] : vector<8x8xf32> to vector<8xf32>
    %204 = vector.shape_cast %203 : vector<8xf32> to vector<8x1xf32>
    %205 = arith.addf %202, %204 : vector<8x1xf32>
    %c3_110 = arith.constant 3 : index
    %c0_111 = arith.constant 0 : index
    %c0_112 = arith.constant 0 : index
    %206 = vector.load %arg19[%c3_110, %c0_111, %c0_112] : memref<4x8x1xf32, #tpu.memory_space<vmem>>, vector<1x8x1xf32>
    %207 = vector.shape_cast %206 : vector<1x8x1xf32> to vector<8x1xf32>
    %208 = vector.shape_cast %205 : vector<8x1xf32> to vector<1x8x1xf32>
    tpu.vector_store %arg19[%c3_110, %c0_111, %c0_112], %208 {strides = array<i32>} : memref<4x8x1xf32, #tpu.memory_space<vmem>>, vector<1x8x1xf32>,
    %c3_113 = arith.constant 3 : index
    %c0_114 = arith.constant 0 : index
    %c0_115 = arith.constant 0 : index
    %209 = vector.load %arg20[%c3_113, %c0_114, %c0_115] : memref<4x8x8xf32, #tpu.memory_space<vmem>>, vector<1x8x8xf32>
    %210 = vector.shape_cast %209 : vector<1x8x8xf32> to vector<8x8xf32>
    %211 = vector.broadcast %196 : vector<8x1xf32> to vector<8x8xf32>
    %212 = arith.mulf %211, %210 : vector<8x8xf32>
    %213 = arith.truncf %199 : vector<8x8xf32> to vector<8x8xbf16>
    %cst_116 = arith.constant dense<0.000000e+00> : vector<8x8xf32>
    %214 = tpu.matmul %213, %185, %cst_116 {dimension_numbers = #tpu.dot_dimension_numbers<[1], [0], [0], [1], [0, 0, 1, 1], [], []>} : vector<8x8xbf16>, vector<8x8xbf16>, vector<8x8xf32> -> vector<8x8xf32>
    %215 = arith.addf %212, %214 : vector<8x8xf32>
    %c3_117 = arith.constant 3 : index
    %c0_118 = arith.constant 0 : index
    %c0_119 = arith.constant 0 : index
    %216 = vector.load %arg20[%c3_117, %c0_118, %c0_119] : memref<4x8x8xf32, #tpu.memory_space<vmem>>, vector<1x8x8xf32>
    %217 = vector.shape_cast %216 : vector<1x8x8xf32> to vector<8x8xf32>
    %218 = vector.shape_cast %215 : vector<8x8xf32> to vector<1x8x8xf32>
    tpu.vector_store %arg20[%c3_117, %c0_118, %c0_119], %218 {strides = array<i32>} : memref<4x8x8xf32, #tpu.memory_space<vmem>>, vector<1x8x8xf32>,
    %c3_120 = arith.constant 3 : index
    %c0_121 = arith.constant 0 : index
    %c0_122 = arith.constant 0 : index
    %219 = vector.load %arg18[%c3_120, %c0_121, %c0_122] : memref<4x8x1xf32, #tpu.memory_space<vmem>>, vector<1x8x1xf32>
    %220 = vector.shape_cast %219 : vector<1x8x1xf32> to vector<8x1xf32>
    %221 = vector.shape_cast %194 : vector<8x1xf32> to vector<1x8x1xf32>
    tpu.vector_store %arg18[%c3_120, %c0_121, %c0_122], %221 {strides = array<i32>} : memref<4x8x1xf32, #tpu.memory_space<vmem>>, vector<1x8x1xf32>,
    %c1_i32 = arith.constant 1 : i32
    %222 = arith.cmpi eq, %arg2, %c1_i32 : i32
    %223 = arith.extui %222 : i1 to i32
    %c0_i32_123 = arith.constant 0 : i32
    %224 = arith.cmpi ne, %223, %c0_i32_123 : i32
    scf.if %224 {
      %c0_124 = arith.constant 0 : index
      %c0_125 = arith.constant 0 : index
      %c0_126 = arith.constant 0 : index
      %225 = vector.load %arg19[%c0_124, %c0_125, %c0_126] : memref<4x8x1xf32, #tpu.memory_space<vmem>>, vector<1x8x1xf32>
      %226 = vector.shape_cast %225 : vector<1x8x1xf32> to vector<8x1xf32>
      %227 = tpu.reciprocal %226 {approx = true} : vector<8x1xf32> -> vector<8x1xf32>
      %c0_127 = arith.constant 0 : index
      %c0_128 = arith.constant 0 : index
      %c0_129 = arith.constant 0 : index
      %228 = vector.load %arg20[%c0_127, %c0_128, %c0_129] : memref<4x8x8xf32, #tpu.memory_space<vmem>>, vector<1x8x8xf32>
      %229 = vector.shape_cast %228 : vector<1x8x8xf32> to vector<8x8xf32>
      %230 = vector.broadcast %227 : vector<8x1xf32> to vector<8x8xf32>
      %231 = arith.mulf %229, %230 : vector<8x8xf32>
      %c1_130 = arith.constant 1 : index
      %c0_131 = arith.constant 0 : index
      %c0_132 = arith.constant 0 : index
      %232 = vector.load %arg19[%c1_130, %c0_131, %c0_132] : memref<4x8x1xf32, #tpu.memory_space<vmem>>, vector<1x8x1xf32>
      %233 = vector.shape_cast %232 : vector<1x8x1xf32> to vector<8x1xf32>
      %234 = tpu.reciprocal %233 {approx = true} : vector<8x1xf32> -> vector<8x1xf32>
      %c1_133 = arith.constant 1 : index
      %c0_134 = arith.constant 0 : index
      %c0_135 = arith.constant 0 : index
      %235 = vector.load %arg20[%c1_133, %c0_134, %c0_135] : memref<4x8x8xf32, #tpu.memory_space<vmem>>, vector<1x8x8xf32>
      %236 = vector.shape_cast %235 : vector<1x8x8xf32> to vector<8x8xf32>
      %237 = vector.broadcast %234 : vector<8x1xf32> to vector<8x8xf32>
      %238 = arith.mulf %236, %237 : vector<8x8xf32>
      %c2_136 = arith.constant 2 : index
      %c0_137 = arith.constant 0 : index
      %c0_138 = arith.constant 0 : index
      %239 = vector.load %arg19[%c2_136, %c0_137, %c0_138] : memref<4x8x1xf32, #tpu.memory_space<vmem>>, vector<1x8x1xf32>
      %240 = vector.shape_cast %239 : vector<1x8x1xf32> to vector<8x1xf32>
      %241 = tpu.reciprocal %240 {approx = true} : vector<8x1xf32> -> vector<8x1xf32>
      %c2_139 = arith.constant 2 : index
      %c0_140 = arith.constant 0 : index
      %c0_141 = arith.constant 0 : index
      %242 = vector.load %arg20[%c2_139, %c0_140, %c0_141] : memref<4x8x8xf32, #tpu.memory_space<vmem>>, vector<1x8x8xf32>
      %243 = vector.shape_cast %242 : vector<1x8x8xf32> to vector<8x8xf32>
      %244 = vector.broadcast %241 : vector<8x1xf32> to vector<8x8xf32>
      %245 = arith.mulf %243, %244 : vector<8x8xf32>
      %c3_142 = arith.constant 3 : index
      %c0_143 = arith.constant 0 : index
      %c0_144 = arith.constant 0 : index
      %246 = vector.load %arg19[%c3_142, %c0_143, %c0_144] : memref<4x8x1xf32, #tpu.memory_space<vmem>>, vector<1x8x1xf32>
      %247 = vector.shape_cast %246 : vector<1x8x1xf32> to vector<8x1xf32>
      %248 = tpu.reciprocal %247 {approx = true} : vector<8x1xf32> -> vector<8x1xf32>
      %c3_145 = arith.constant 3 : index
      %c0_146 = arith.constant 0 : index
      %c0_147 = arith.constant 0 : index
      %249 = vector.load %arg20[%c3_145, %c0_146, %c0_147] : memref<4x8x8xf32, #tpu.memory_space<vmem>>, vector<1x8x8xf32>
      %250 = vector.shape_cast %249 : vector<1x8x8xf32> to vector<8x8xf32>
      %251 = vector.broadcast %248 : vector<8x1xf32> to vector<8x8xf32>
      %252 = arith.mulf %250, %251 : vector<8x8xf32>
      %253 = tpu.concatenate %231, %238, %245, %252 in 1 : vector<8x8xf32>, vector<8x8xf32>, vector<8x8xf32>, vector<8x8xf32> -> vector<8x32xf32>
      %254 = arith.truncf %253 : vector<8x32xf32> to vector<8x32xbf16>
      %c0_148 = arith.constant 0 : index
      %c0_149 = arith.constant 0 : index
      %255 = vector.load %arg9[%c0_148, %c0_149] : memref<32x32xbf16, #tpu.memory_space<vmem>>, vector<32x32xbf16>
      %cst_150 = arith.constant dense<0.000000e+00> : vector<8x32xf32>
      %256 = tpu.matmul %254, %255, %cst_150 {dimension_numbers = #tpu.dot_dimension_numbers<[1], [0], [0], [1], [0, 0, 1, 1], [], []>} : vector<8x32xbf16>, vector<32x32xbf16>, vector<8x32xf32> -> vector<8x32xf32>
      %c0_151 = arith.constant 0 : index
      %c0_152 = arith.constant 0 : index
      %257 = vector.load %arg10[%c0_151, %c0_152] : memref<1x32xf32, #tpu.memory_space<vmem>>, vector<1x32xf32>
      %258 = vector.broadcast %257 : vector<1x32xf32> to vector<8x32xf32>
      %259 = arith.addf %256, %258 : vector<8x32xf32>
      %c0_153 = arith.constant 0 : index
      %c0_154 = arith.constant 0 : index
      %c0_155 = arith.constant 0 : index
      %260 = vector.load %arg16[%c0_153, %c0_154, %c0_155] : memref<1x8x32xf32, #tpu.memory_space<vmem>>, vector<1x8x32xf32>
      %261 = vector.shape_cast %260 : vector<1x8x32xf32> to vector<8x32xf32>
      %262 = vector.shape_cast %259 : vector<8x32xf32> to vector<1x8x32xf32>
      tpu.vector_store %arg16[%c0_153, %c0_154, %c0_155], %262 {strides = array<i32>} : memref<1x8x32xf32, #tpu.memory_space<vmem>>, vector<1x8x32xf32>,
    } else {
    }
    return
  }
  func.func @transform_0(%arg0: i32, %arg1: i32, %arg2: i32) -> (i32, i32, i32) {
    %c0_i32 = arith.constant 0 : i32
    %c0_i32_0 = arith.constant 0 : i32
    return %arg0, %arg1, %c0_i32 : i32, i32, i32
  }
  func.func @transform_1(%arg0: i32, %arg1: i32, %arg2: i32) -> (i32, i32, i32) {
    %c0_i32 = arith.constant 0 : i32
    %c0_i32_0 = arith.constant 0 : i32
    return %arg0, %arg2, %c0_i32 : i32, i32, i32
  }
  func.func @transform_2(%arg0: i32, %arg1: i32, %arg2: i32) -> (i32, i32, i32, i32) {
    %c0_i32 = arith.constant 0 : i32
    %c0_i32_0 = arith.constant 0 : i32
    return %arg0, %arg1, %arg2, %c0_i32 : i32, i32, i32, i32
  }
  func.func @transform_3(%arg0: i32, %arg1: i32, %arg2: i32) -> (i32, i32) {
    %c0_i32 = arith.constant 0 : i32
    %c0_i32_0 = arith.constant 0 : i32
    %c0_i32_1 = arith.constant 0 : i32
    return %c0_i32, %c0_i32_0 : i32, i32
  }
  func.func @transform_4(%arg0: i32, %arg1: i32, %arg2: i32) -> (i32, i32) {
    %c0_i32 = arith.constant 0 : i32
    %c0_i32_0 = arith.constant 0 : i32
    %c0_i32_1 = arith.constant 0 : i32
    return %c0_i32, %c0_i32_0 : i32, i32
  }
  func.func @transform_5(%arg0: i32, %arg1: i32, %arg2: i32) -> (i32, i32) {
    %c0_i32 = arith.constant 0 : i32
    %c0_i32_0 = arith.constant 0 : i32
    %c0_i32_1 = arith.constant 0 : i32
    return %c0_i32, %c0_i32_0 : i32, i32
  }
  func.func @transform_6(%arg0: i32, %arg1: i32, %arg2: i32) -> (i32, i32) {
    %c0_i32 = arith.constant 0 : i32
    %c0_i32_0 = arith.constant 0 : i32
    %c0_i32_1 = arith.constant 0 : i32
    return %c0_i32, %c0_i32_0 : i32, i32
  }
  func.func @transform_7(%arg0: i32, %arg1: i32, %arg2: i32) -> (i32, i32) {
    %c0_i32 = arith.constant 0 : i32
    %c0_i32_0 = arith.constant 0 : i32
    %c0_i32_1 = arith.constant 0 : i32
    return %c0_i32, %c0_i32_0 : i32, i32
  }
  func.func @transform_8(%arg0: i32, %arg1: i32, %arg2: i32) -> (i32, i32) {
    %c0_i32 = arith.constant 0 : i32
    %c0_i32_0 = arith.constant 0 : i32
    %c0_i32_1 = arith.constant 0 : i32
    return %c0_i32, %c0_i32_0 : i32, i32
  }
  func.func @transform_9(%arg0: i32, %arg1: i32, %arg2: i32) -> (i32, i32) {
    %c0_i32 = arith.constant 0 : i32
    %c0_i32_0 = arith.constant 0 : i32
    %c0_i32_1 = arith.constant 0 : i32
    return %c0_i32, %c0_i32_0 : i32, i32
  }
  func.func @transform_10(%arg0: i32, %arg1: i32, %arg2: i32) -> (i32, i32) {
    %c0_i32 = arith.constant 0 : i32
    %c0_i32_0 = arith.constant 0 : i32
    %c0_i32_1 = arith.constant 0 : i32
    return %c0_i32, %c0_i32_0 : i32, i32
  }
  func.func @transform_11(%arg0: i32, %arg1: i32, %arg2: i32) -> (i32, i32) {
    %c0_i32 = arith.constant 0 : i32
    %c0_i32_0 = arith.constant 0 : i32
    %c0_i32_1 = arith.constant 0 : i32
    return %c0_i32, %c0_i32_0 : i32, i32
  }
  func.func @transform_12(%arg0: i32, %arg1: i32, %arg2: i32) -> (i32, i32) {
    %c0_i32 = arith.constant 0 : i32
    %c0_i32_0 = arith.constant 0 : i32
    %c0_i32_1 = arith.constant 0 : i32
    return %c0_i32, %c0_i32_0 : i32, i32
  }
  func.func @transform_13(%arg0: i32, %arg1: i32, %arg2: i32) -> (i32, i32, i32) {
    %c0_i32 = arith.constant 0 : i32
    %c0_i32_0 = arith.constant 0 : i32
    return %arg0, %arg1, %c0_i32 : i32, i32, i32
  }
}

</mosaic_0001>

<llo_original>
// kernel: tpu_custom_call.1
$region0: #{tpu_custom_call.1}
  #allocation0 [shape = 'u32[]', space=smem, size = 0x4, offset = 0x4, fixed_abs, tag = 'smem constant byte address 0x4 - core index']
  #allocation1 [shape = 'u32[144,128]{1,0:T(1,128)}', space=vmem, size = 0x12000, scoped, tag = 'internal scratch']
  #allocation2 [shape = 'bf16[8,32]{1,0:T(8,128)(2,1)}', space=vmem, size = 0x800, scoped, tag = 'scratch operand']
  #allocation3 [shape = 'f32[4,8,1]{2,1,0:T(8,128)}', space=vmem, size = 0x4000, scoped, tag = 'scratch operand']
  #allocation4 [shape = 'f32[4,8,1]{2,1,0:T(8,128)}', space=vmem, size = 0x4000, scoped, tag = 'scratch operand']
  #allocation5 [shape = 'f32[4,8,8]{2,1,0:T(8,128)}', space=vmem, size = 0x4000, scoped, tag = 'scratch operand']
  %s0 = inlined_call_operand.hbm [shape: f32[2,16,32], index: 0, kind: input, shape index: {}]
  %s1 = inlined_call_operand.hbm [shape: f32[2,16,32], index: 1, kind: input, shape index: {}]
  %s2 = inlined_call_operand.hbm [shape: bf16[2,16,16,16], index: 2, kind: input, shape index: {}]
  %s3 = inlined_call_operand.vmem [shape: bf16[32,32], index: 3, kind: input, shape index: {}]
  %s4 = inlined_call_operand.hbm [shape: bf16[32,32], index: 4, kind: input, shape index: {}]
  %s5 = inlined_call_operand.hbm [shape: bf16[32,32], index: 5, kind: input, shape index: {}]
  %s6 = inlined_call_operand.vmem [shape: bf16[32,32], index: 6, kind: input, shape index: {}]
  %s7 = inlined_call_operand.vmem [shape: f32[1,32], index: 7, kind: input, shape index: {}]
  %s8 = inlined_call_operand.vmem [shape: bf16[16,4], index: 8, kind: input, shape index: {}]
  %s9 = inlined_call_operand.vmem [shape: f32[1,32], index: 9, kind: input, shape index: {}]
  %s10 = inlined_call_operand.vmem [shape: f32[1,32], index: 10, kind: input, shape index: {}]
  %s11 = inlined_call_operand.vmem [shape: f32[1,16], index: 11, kind: input, shape index: {}]
  %s12 = inlined_call_operand.vmem [shape: f32[1,16], index: 12, kind: input, shape index: {}]
  %s13 = inlined_call_operand.hbm [shape: f32[2,16,32], index: 13, kind: output, shape index: {}]
  %s14 = sld [smem:[#allocation0]]
  $region113: #{tpu_custom_call.1} parent=0
    _
  %s16 = ssub.s32 1, %s14
  %s17 = scalar_select 0, %s16, %s14
  $region1: #{tpu_custom_call.1} parent=0
    #allocation6 [shape = 'u8[8192]{0}', space=vmem, size = 0x2000, scoped, tag = 'input window, operand 0']
    #allocation7 [shape = 's32[2]{0}', space=sflag, size = 0x8, scoped, tag = 'scoped memory for tpu_custom_call.1']
    #allocation8 [shape = 's32[2]{0}', space=sflag, size = 0x8, scoped, tag = 'scoped memory for tpu_custom_call.1']
    #allocation9 [shape = 'u8[8192]{0}', space=vmem, size = 0x2000, scoped, tag = 'input window, operand 1']
    #allocation10 [shape = 's32[2]{0}', space=sflag, size = 0x8, scoped, tag = 'scoped memory for tpu_custom_call.1']
    #allocation11 [shape = 'u8[32768]{0}', space=vmem, size = 0x8000, scoped, tag = 'input window, operand 2']
    #allocation12 [shape = 'u8[8192]{0}', space=vmem, size = 0x2000, scoped, tag = 'input window, operand 4, single buffered']
    #allocation13 [shape = 's32[1]{0}', space=sflag, size = 0x4, scoped, tag = 'scoped memory for tpu_custom_call.1']
    #allocation14 [shape = 'u8[8192]{0}', space=vmem, size = 0x2000, scoped, tag = 'input window, operand 5, single buffered']
    #allocation15 [shape = 'u8[8192]{0}', space=vmem, size = 0x2000, scoped, tag = 'output window, operand 0']
    %18 = vsyncpa [#allocation7], 0
    %s19 = scalar_lea.sflag [#allocation7], 1
    %20 = vsyncpa %s19, 0
    %21 = vsyncpa [#allocation10], 0
    %s22 = scalar_lea.sflag [#allocation10], 1
    %23 = vsyncpa %s22, 0
    %24 = vsyncpa [#allocation13], 0
    %25 = vsyncpa [#allocation8], 0
    %s26 = scalar_lea.sflag [#allocation8], 1
    %27 = vsyncpa %s26, 0
    loop: start=0, step=1, limit=10
    $region2: #{tpu_custom_call.1} parent=1 // loop_pre_header
      _
    $region3: #{tpu_custom_call.1} parent=1 // loop_header
      %s29 = sphi 0, %s33
      %p30 = scmp.ge.s32.totalorder %s29, 10
      %s36 = sphi 0, %s55
      %s37 = sphi 0, %s51
      %s38 = sphi 0, %s47
      %s39 = sphi 0, %s36
      %s40 = sphi 0, %s37
      %s41 = sphi 0, %s38
      %s42 = sphi 0, %s39
      %s43 = sphi 0, %s40
      %s44 = sphi 0, %s41
      %s60 = sphi 0, %s62
      %s63 = sphi 0, %s60
      %s64 = sphi 0, %s63
      %s80 = sphi 0, %s64
      %s88 = sphi 0, %s90
      %s91 = sphi 0, %s88
      %s92 = sphi 0, %s91
      %s108 = sphi 0, %s92
      %s118 = sphi 0, %s120
      %s121 = sphi 0, %s118
      %s122 = sphi 0, %s121
      %s138 = sphi 0, %s122
      %s142 = sphi 0, %s142
      %s144 = sphi 0, %s142
      %s145 = sphi 0, %s144
      %s159 = sphi 0, %s145
      %s163 = sphi 0, %s163
      %s165 = sphi 0, %s163
      %s166 = sphi 0, %s165
      %s180 = sphi 0, %s166
      %s184 = sphi 0, %s184
      %s186 = sphi 0, %s184
      %s187 = sphi 0, %s186
      %s201 = sphi 0, %s187
      %s205 = sphi 0, %s205
      %s207 = sphi 0, %s205
      %s208 = sphi 0, %s207
      %s222 = sphi 0, %s208
      %s226 = sphi 0, %s226
      %s228 = sphi 0, %s226
      %s229 = sphi 0, %s228
      %s243 = sphi 0, %s229
      %s247 = sphi 0, %s247
      %s249 = sphi 0, %s247
      %s250 = sphi 0, %s249
      %s264 = sphi 0, %s250
      %s268 = sphi 0, %s268
      %s270 = sphi 0, %s268
      %s271 = sphi 0, %s270
      %s285 = sphi 0, %s271
      %s289 = sphi 0, %s289
      %s291 = sphi 0, %s289
      %s292 = sphi 0, %s291
      %s306 = sphi 0, %s292
      %s310 = sphi 0, %s310
      %s312 = sphi 0, %s310
      %s313 = sphi 0, %s312
      %s327 = sphi 0, %s313
      %s331 = sphi 0, %s331
      %s333 = sphi 0, %s331
      %s334 = sphi 0, %s333
      %s348 = sphi 0, %s334
      %s356 = sphi 0, %s358
      %s359 = sphi 0, %s356
      %s360 = sphi 0, %s359
      %s376 = sphi 0, %s360
    $region4: #{tpu_custom_call.1} parent=1 // loop_header_branch
      %32 = sbr.rel (%p30) target = $region8
    $region5: #{tpu_custom_call.1} parent=1 // loop_body
      %s34 = ssub.s32 %s29, 1
      %s35 = ssub.s32 %s29, 2
      %s45 = sadd.s32 1, %s38
      %p46 = scmp.ge.s32.totalorder %s45, 2
      %s47 = scalar_select %p46, 0, %s45
      %s48 = sadd.s32 1, %s37
      %s49 = scalar_select %p46, %s48, %s37
      %p50 = scmp.ge.s32.totalorder %s49, 2
      %s51 = scalar_select %p50, 0, %s49
      %s52 = sadd.s32 1, %s36
      %s53 = scalar_select %p50, %s52, %s36
      %p54 = scmp.ge.s32.totalorder %s53, 2
      %s55 = scalar_select %p54, 0, %s53
      %s56 = ssub.s32 %s36, %s55
      %s57 = ssub.s32 %s37, %s51
      %s58 = sor.u32 %s56, %s57
      %p59 = scmp.eq.s32.totalorder %s58, 0
      %s61 = sadd.s32 %s60, 1
      %s62 = scalar_select %p59, %s60, %s61
      %p65 = pneg %p59
      %p66 = scmp.eq.s32.totalorder %s29, 7
      %p67 = por %p65, %p66
      %p68 = scmp.ne.s32.totalorder %s60, %s63
      %p69 = scmp.eq.s32.totalorder %s29, 0
      %p70 = por %p68, %p69
      %p71 = scmp.ne.s32.totalorder %s60, %s63
      %p72 = scmp.eq.s32.totalorder %s34, 7
      %p73 = por %p71, %p72
      %p74 = scmp.ne.s32.totalorder %s63, %s64
      %p75 = scmp.eq.s32.totalorder %s34, 0
      %p76 = por %p74, %p75
      %p77 = scmp.ne.s32.totalorder %s63, %s64
      %p78 = scmp.eq.s32.totalorder %s35, 7
      %p79 = por %p77, %p78
      %p81 = scmp.ne.s32.totalorder %s64, %s80
      %p82 = scmp.eq.s32.totalorder %s35, 0
      %p83 = por %p81, %p82
      %s84 = ssub.s32 %s36, %s55
      %s85 = ssub.s32 %s38, %s47
      %s86 = sor.u32 %s84, %s85
      %p87 = scmp.eq.s32.totalorder %s86, 0
      %s89 = sadd.s32 %s88, 1
      %s90 = scalar_select %p87, %s88, %s89
      %p93 = pneg %p87
      %p94 = scmp.eq.s32.totalorder %s29, 7
      %p95 = por %p93, %p94
      %p96 = scmp.ne.s32.totalorder %s88, %s91
      %p97 = scmp.eq.s32.totalorder %s29, 0
      %p98 = por %p96, %p97
      %p99 = scmp.ne.s32.totalorder %s88, %s91
      %p100 = scmp.eq.s32.totalorder %s34, 7
      %p101 = por %p99, %p100
      %p102 = scmp.ne.s32.totalorder %s91, %s92
      %p103 = scmp.eq.s32.totalorder %s34, 0
      %p104 = por %p102, %p103
      %p105 = scmp.ne.s32.totalorder %s91, %s92
      %p106 = scmp.eq.s32.totalorder %s35, 7
      %p107 = por %p105, %p106
      %p109 = scmp.ne.s32.totalorder %s92, %s108
      %p110 = scmp.eq.s32.totalorder %s35, 0
      %p111 = por %p109, %p110
      %s112 = ssub.s32 %s36, %s55
      %s113 = ssub.s32 %s37, %s51
      %s114 = sor.u32 %s112, %s113
      %s115 = ssub.s32 %s38, %s47
      %s116 = sor.u32 %s114, %s115
      %p117 = scmp.eq.s32.totalorder %s116, 0
      %s119 = sadd.s32 %s118, 1
      %s120 = scalar_select %p117, %s118, %s119
      %p123 = pneg %p117
      %p124 = scmp.eq.s32.totalorder %s29, 7
      %p125 = por %p123, %p124
      %p126 = scmp.ne.s32.totalorder %s118, %s121
      %p127 = scmp.eq.s32.totalorder %s29, 0
      %p128 = por %p126, %p127
      %p129 = scmp.ne.s32.totalorder %s118, %s121
      %p130 = scmp.eq.s32.totalorder %s34, 7
      %p131 = por %p129, %p130
      %p132 = scmp.ne.s32.totalorder %s121, %s122
      %p133 = scmp.eq.s32.totalorder %s34, 0
      %p134 = por %p132, %p133
      %p135 = scmp.ne.s32.totalorder %s121, %s122
      %p136 = scmp.eq.s32.totalorder %s35, 7
      %p137 = por %p135, %p136
      %p139 = scmp.ne.s32.totalorder %s122, %s138
      %p140 = scmp.eq.s32.totalorder %s35, 0
      %p141 = por %p139, %p140
      %s143 = sadd.s32 %s142, 1
      %p146 = scmp.eq.s32.totalorder %s29, 7
      %p147 = scmp.ne.s32.totalorder %s142, %s144
      %p148 = scmp.eq.s32.totalorder %s29, 0
      %p149 = por %p147, %p148
      %p150 = scmp.ne.s32.totalorder %s142, %s144
      %p151 = scmp.eq.s32.totalorder %s34, 7
      %p152 = por %p150, %p151
      %p153 = scmp.ne.s32.totalorder %s144, %s145
      %p154 = scmp.eq.s32.totalorder %s34, 0
      %p155 = por %p153, %p154
      %p156 = scmp.ne.s32.totalorder %s144, %s145
      %p157 = scmp.eq.s32.totalorder %s35, 7
      %p158 = por %p156, %p157
      %p160 = scmp.ne.s32.totalorder %s145, %s159
      %p161 = scmp.eq.s32.totalorder %s35, 0
      %p162 = por %p160, %p161
      %s164 = sadd.s32 %s163, 1
      %p167 = scmp.eq.s32.totalorder %s29, 7
      %p168 = scmp.ne.s32.totalorder %s163, %s165
      %p169 = scmp.eq.s32.totalorder %s29, 0
      %p170 = por %p168, %p169
      %p171 = scmp.ne.s32.totalorder %s163, %s165
      %p172 = scmp.eq.s32.totalorder %s34, 7
      %p173 = por %p171, %p172
      %p174 = scmp.ne.s32.totalorder %s165, %s166
      %p175 = scmp.eq.s32.totalorder %s34, 0
      %p176 = por %p174, %p175
      %p177 = scmp.ne.s32.totalorder %s165, %s166
      %p178 = scmp.eq.s32.totalorder %s35, 7
      %p179 = por %p177, %p178
      %p181 = scmp.ne.s32.totalorder %s166, %s180
      %p182 = scmp.eq.s32.totalorder %s35, 0
      %p183 = por %p181, %p182
      %s185 = sadd.s32 %s184, 1
      %p188 = scmp.eq.s32.totalorder %s29, 7
      %p189 = scmp.ne.s32.totalorder %s184, %s186
      %p190 = scmp.eq.s32.totalorder %s29, 0
      %p191 = por %p189, %p190
      %p192 = scmp.ne.s32.totalorder %s184, %s186
      %p193 = scmp.eq.s32.totalorder %s34, 7
      %p194 = por %p192, %p193
      %p195 = scmp.ne.s32.totalorder %s186, %s187
      %p196 = scmp.eq.s32.totalorder %s34, 0
      %p197 = por %p195, %p196
      %p198 = scmp.ne.s32.totalorder %s186, %s187
      %p199 = scmp.eq.s32.totalorder %s35, 7
      %p200 = por %p198, %p199
      %p202 = scmp.ne.s32.totalorder %s187, %s201
      %p203 = scmp.eq.s32.totalorder %s35, 0
      %p204 = por %p202, %p203
      %s206 = sadd.s32 %s205, 1
      %p209 = scmp.eq.s32.totalorder %s29, 7
      %p210 = scmp.ne.s32.totalorder %s205, %s207
      %p211 = scmp.eq.s32.totalorder %s29, 0
      %p212 = por %p210, %p211
      %p213 = scmp.ne.s32.totalorder %s205, %s207
      %p214 = scmp.eq.s32.totalorder %s34, 7
      %p215 = por %p213, %p214
      %p216 = scmp.ne.s32.totalorder %s207, %s208
      %p217 = scmp.eq.s32.totalorder %s34, 0
      %p218 = por %p216, %p217
      %p219 = scmp.ne.s32.totalorder %s207, %s208
      %p220 = scmp.eq.s32.totalorder %s35, 7
      %p221 = por %p219, %p220
      %p223 = scmp.ne.s32.totalorder %s208, %s222
      %p224 = scmp.eq.s32.totalorder %s35, 0
      %p225 = por %p223, %p224
      %s227 = sadd.s32 %s226, 1
      %p230 = scmp.eq.s32.totalorder %s29, 7
      %p231 = scmp.ne.s32.totalorder %s226, %s228
      %p232 = scmp.eq.s32.totalorder %s29, 0
      %p233 = por %p231, %p232
      %p234 = scmp.ne.s32.totalorder %s226, %s228
      %p235 = scmp.eq.s32.totalorder %s34, 7
      %p236 = por %p234, %p235
      %p237 = scmp.ne.s32.totalorder %s228, %s229
      %p238 = scmp.eq.s32.totalorder %s34, 0
      %p239 = por %p237, %p238
      %p240 = scmp.ne.s32.totalorder %s228, %s229
      %p241 = scmp.eq.s32.totalorder %s35, 7
      %p242 = por %p240, %p241
      %p244 = scmp.ne.s32.totalorder %s229, %s243
      %p245 = scmp.eq.s32.totalorder %s35, 0
      %p246 = por %p244, %p245
      %s248 = sadd.s32 %s247, 1
      %p251 = scmp.eq.s32.totalorder %s29, 7
      %p252 = scmp.ne.s32.totalorder %s247, %s249
      %p253 = scmp.eq.s32.totalorder %s29, 0
      %p254 = por %p252, %p253
      %p255 = scmp.ne.s32.totalorder %s247, %s249
      %p256 = scmp.eq.s32.totalorder %s34, 7
      %p257 = por %p255, %p256
      %p258 = scmp.ne.s32.totalorder %s249, %s250
      %p259 = scmp.eq.s32.totalorder %s34, 0
      %p260 = por %p258, %p259
      %p261 = scmp.ne.s32.totalorder %s249, %s250
      %p262 = scmp.eq.s32.totalorder %s35, 7
      %p263 = por %p261, %p262
      %p265 = scmp.ne.s32.totalorder %s250, %s264
      %p266 = scmp.eq.s32.totalorder %s35, 0
      %p267 = por %p265, %p266
      %s269 = sadd.s32 %s268, 1
      %p272 = scmp.eq.s32.totalorder %s29, 7
      %p273 = scmp.ne.s32.totalorder %s268, %s270
      %p274 = scmp.eq.s32.totalorder %s29, 0
      %p275 = por %p273, %p274
      %p276 = scmp.ne.s32.totalorder %s268, %s270
      %p277 = scmp.eq.s32.totalorder %s34, 7
      %p278 = por %p276, %p277
      %p279 = scmp.ne.s32.totalorder %s270, %s271
      %p280 = scmp.eq.s32.totalorder %s34, 0
      %p281 = por %p279, %p280
      %p282 = scmp.ne.s32.totalorder %s270, %s271
      %p283 = scmp.eq.s32.totalorder %s35, 7
      %p284 = por %p282, %p283
      %p286 = scmp.ne.s32.totalorder %s271, %s285
      %p287 = scmp.eq.s32.totalorder %s35, 0
      %p288 = por %p286, %p287
      %s290 = sadd.s32 %s289, 1
      %p293 = scmp.eq.s32.totalorder %s29, 7
      %p294 = scmp.ne.s32.totalorder %s289, %s291
      %p295 = scmp.eq.s32.totalorder %s29, 0
      %p296 = por %p294, %p295
      %p297 = scmp.ne.s32.totalorder %s289, %s291
      %p298 = scmp.eq.s32.totalorder %s34, 7
      %p299 = por %p297, %p298
      %p300 = scmp.ne.s32.totalorder %s291, %s292
      %p301 = scmp.eq.s32.totalorder %s34, 0
      %p302 = por %p300, %p301
      %p303 = scmp.ne.s32.totalorder %s291, %s292
      %p304 = scmp.eq.s32.totalorder %s35, 7
      %p305 = por %p303, %p304
      %p307 = scmp.ne.s32.totalorder %s292, %s306
      %p308 = scmp.eq.s32.totalorder %s35, 0
      %p309 = por %p307, %p308
      %s311 = sadd.s32 %s310, 1
      %p314 = scmp.eq.s32.totalorder %s29, 7
      %p315 = scmp.ne.s32.totalorder %s310, %s312
      %p316 = scmp.eq.s32.totalorder %s29, 0
      %p317 = por %p315, %p316
      %p318 = scmp.ne.s32.totalorder %s310, %s312
      %p319 = scmp.eq.s32.totalorder %s34, 7
      %p320 = por %p318, %p319
      %p321 = scmp.ne.s32.totalorder %s312, %s313
      %p322 = scmp.eq.s32.totalorder %s34, 0
      %p323 = por %p321, %p322
      %p324 = scmp.ne.s32.totalorder %s312, %s313
      %p325 = scmp.eq.s32.totalorder %s35, 7
      %p326 = por %p324, %p325
      %p328 = scmp.ne.s32.totalorder %s313, %s327
      %p329 = scmp.eq.s32.totalorder %s35, 0
      %p330 = por %p328, %p329
      %s332 = sadd.s32 %s331, 1
      %p335 = scmp.eq.s32.totalorder %s29, 7
      %p336 = scmp.ne.s32.totalorder %s331, %s333
      %p337 = scmp.eq.s32.totalorder %s29, 0
      %p338 = por %p336, %p337
      %p339 = scmp.ne.s32.totalorder %s331, %s333
      %p340 = scmp.eq.s32.totalorder %s34, 7
      %p341 = por %p339, %p340
      %p342 = scmp.ne.s32.totalorder %s333, %s334
      %p343 = scmp.eq.s32.totalorder %s34, 0
      %p344 = por %p342, %p343
      %p345 = scmp.ne.s32.totalorder %s333, %s334
      %p346 = scmp.eq.s32.totalorder %s35, 7
      %p347 = por %p345, %p346
      %p349 = scmp.ne.s32.totalorder %s334, %s348
      %p350 = scmp.eq.s32.totalorder %s35, 0
      %p351 = por %p349, %p350
      %s352 = ssub.s32 %s36, %s55
      %s353 = ssub.s32 %s37, %s51
      %s354 = sor.u32 %s352, %s353
      %p355 = scmp.eq.s32.totalorder %s354, 0
      %s357 = sadd.s32 %s356, 1
      %s358 = scalar_select %p355, %s356, %s357
      %p361 = pneg %p355
      %p362 = scmp.eq.s32.totalorder %s29, 7
      %p363 = por %p361, %p362
      %p364 = scmp.ne.s32.totalorder %s356, %s359
      %p365 = scmp.eq.s32.totalorder %s29, 0
      %p366 = por %p364, %p365
      %p367 = scmp.ne.s32.totalorder %s356, %s359
      %p368 = scmp.eq.s32.totalorder %s34, 7
      %p369 = por %p367, %p368
      %p370 = scmp.ne.s32.totalorder %s359, %s360
      %p371 = scmp.eq.s32.totalorder %s34, 0
      %p372 = por %p370, %p371
      %p373 = scmp.ne.s32.totalorder %s359, %s360
      %p374 = scmp.eq.s32.totalorder %s35, 7
      %p375 = por %p373, %p374
      %p377 = scmp.ne.s32.totalorder %s360, %s376
      %p378 = scmp.eq.s32.totalorder %s35, 0
      %p379 = por %p377, %p378
      %p380 = scmp.le.s32.totalorder 1, %s29
      %p381 = scmp.lt.s32.totalorder %s29, 9
      %p382 = pnand %p380, %p381
      %p383 = pneg %p382
      // Predicated region
      $region9: #{tpu_custom_call.1} parent=5 // pred_check
        _
      $region10: #{tpu_custom_call.1} parent=5 // pred_check_branch
        %385 = sbr.rel (%p382) target = $region12
      $region11: #{tpu_custom_call.1} parent=5 // pred_region
        %s386 = ssub.s32 %s29, 1
        // Predicated region
        $region13: #{tpu_custom_call.1} parent=11 // pred_check
          %p387 = pneg %p155
        $region14: #{tpu_custom_call.1} parent=11 // pred_check_branch
          %389 = sbr.rel (%p387) target = $region16
        $region15: #{tpu_custom_call.1} parent=11 // pred_region
          _
        $region16: #{tpu_custom_call.1} parent=11 // pred_fallthru
          _
        // Predicated region
        $region17: #{tpu_custom_call.1} parent=11 // pred_check
          %p390 = pneg %p176
        $region18: #{tpu_custom_call.1} parent=11 // pred_check_branch
          %392 = sbr.rel (%p390) target = $region20
        $region19: #{tpu_custom_call.1} parent=11 // pred_region
          %s394 = ssub.s32 256, 256
          %395 = vsyncadd [#allocation13], %s394
          %s396 = sshll.u32 [#allocation12], 4
          %s397 = int_to_ptr.vmem [resolvable:$true] %s396
          %402 = dma.hbm_to_vmem [thread:$0]  %s4, 256, %s397, [#allocation13], 64, 64, 4
        $region20: #{tpu_custom_call.1} parent=11 // pred_fallthru
          _
        // Predicated region
        $region21: #{tpu_custom_call.1} parent=11 // pred_check
          %p403 = pneg %p197
        $region22: #{tpu_custom_call.1} parent=11 // pred_check_branch
          %405 = sbr.rel (%p403) target = $region24
        $region23: #{tpu_custom_call.1} parent=11 // pred_region
          %s407 = ssub.s32 256, 256
          %408 = vsyncadd [#allocation13], %s407
          %s409 = sshll.u32 [#allocation14], 4
          %s410 = int_to_ptr.vmem [resolvable:$true] %s409
          %415 = dma.hbm_to_vmem [thread:$0]  %s5, 256, %s410, [#allocation13], 64, 64, 4
        $region24: #{tpu_custom_call.1} parent=11 // pred_fallthru
          _
        // Predicated region
        $region25: #{tpu_custom_call.1} parent=11 // pred_check
          %p416 = pneg %p218
        $region26: #{tpu_custom_call.1} parent=11 // pred_check_branch
          %418 = sbr.rel (%p416) target = $region28
        $region27: #{tpu_custom_call.1} parent=11 // pred_region
          _
        $region28: #{tpu_custom_call.1} parent=11 // pred_fallthru
          _
        // Predicated region
        $region29: #{tpu_custom_call.1} parent=11 // pred_check
          %p419 = pneg %p239
        $region30: #{tpu_custom_call.1} parent=11 // pred_check_branch
          %421 = sbr.rel (%p419) target = $region32
        $region31: #{tpu_custom_call.1} parent=11 // pred_region
          _
        $region32: #{tpu_custom_call.1} parent=11 // pred_fallthru
          _
        // Predicated region
        $region33: #{tpu_custom_call.1} parent=11 // pred_check
          %p422 = pneg %p260
        $region34: #{tpu_custom_call.1} parent=11 // pred_check_branch
          %424 = sbr.rel (%p422) target = $region36
        $region35: #{tpu_custom_call.1} parent=11 // pred_region
          _
        $region36: #{tpu_custom_call.1} parent=11 // pred_fallthru
          _
        // Predicated region
        $region37: #{tpu_custom_call.1} parent=11 // pred_check
          %p425 = pneg %p281
        $region38: #{tpu_custom_call.1} parent=11 // pred_check_branch
          %427 = sbr.rel (%p425) target = $region40
        $region39: #{tpu_custom_call.1} parent=11 // pred_region
          _
        $region40: #{tpu_custom_call.1} parent=11 // pred_fallthru
          _
        // Predicated region
        $region41: #{tpu_custom_call.1} parent=11 // pred_check
          %p428 = pneg %p302
        $region42: #{tpu_custom_call.1} parent=11 // pred_check_branch
          %430 = sbr.rel (%p428) target = $region44
        $region43: #{tpu_custom_call.1} parent=11 // pred_region
          _
        $region44: #{tpu_custom_call.1} parent=11 // pred_fallthru
          _
        // Predicated region
        $region45: #{tpu_custom_call.1} parent=11 // pred_check
          %p431 = pneg %p323
        $region46: #{tpu_custom_call.1} parent=11 // pred_check_branch
          %433 = sbr.rel (%p431) target = $region48
        $region47: #{tpu_custom_call.1} parent=11 // pred_region
          _
        $region48: #{tpu_custom_call.1} parent=11 // pred_fallthru
          _
        // Predicated region
        $region49: #{tpu_custom_call.1} parent=11 // pred_check
          %p434 = pneg %p344
        $region50: #{tpu_custom_call.1} parent=11 // pred_check_branch
          %436 = sbr.rel (%p434) target = $region52
        $region51: #{tpu_custom_call.1} parent=11 // pred_region
          _
        $region52: #{tpu_custom_call.1} parent=11 // pred_fallthru
          _
      $region12: #{tpu_custom_call.1} parent=5 // pred_fallthru
        _
      %p437 = scmp.lt.s32.totalorder %s29, 8
      // Predicated region
      $region53: #{tpu_custom_call.1} parent=5 // pred_check
        %p438 = pneg %p437
      $region54: #{tpu_custom_call.1} parent=5 // pred_check_branch
        %440 = sbr.rel (%p438) target = $region56
      $region55: #{tpu_custom_call.1} parent=5 // pred_region
        // Predicated region
        $region57: #{tpu_custom_call.1} parent=55 // pred_check
          %p441 = pneg %p70
        $region58: #{tpu_custom_call.1} parent=55 // pred_check_branch
          %443 = sbr.rel (%p441) target = $region60
        $region59: #{tpu_custom_call.1} parent=55 // pred_region
          %s444 = sand.u32 %s60, 1
          %s445 = scalar_lea.sflag [#allocation7], %s444
          %s446 = sand.u32 %s60, 1
          %s447 = smul.addr %s446, 8
          %s448 = scalar_lea.vmem [#allocation6], %s447
          %s450 = ssub.s32 128, 128
          %451 = vsyncadd %s445, %s450
          %s452 = smul.addr %s36, 2
          %s453 = sadd.s32 %s37, %s452
          %s454 = smul.addr %s453, 128
          %s455 = scalar_lea.hbm %s0, %s454
          %s457 = sshll.u32 %s448, 4
          %s458 = int_to_ptr.vmem [resolvable:$true] %s457
          %460 = dma.hbm_to_vmem [thread:$0]  %s455, 128, %s458, %s445
        $region60: #{tpu_custom_call.1} parent=55 // pred_fallthru
          _
        // Predicated region
        $region61: #{tpu_custom_call.1} parent=55 // pred_check
          %p461 = pneg %p98
        $region62: #{tpu_custom_call.1} parent=55 // pred_check_branch
          %463 = sbr.rel (%p461) target = $region64
        $region63: #{tpu_custom_call.1} parent=55 // pred_region
          %s464 = sand.u32 %s29, 1
          %s465 = scalar_lea.sflag [#allocation10], %s464
          %s466 = sand.u32 %s88, 1
          %s467 = smul.addr %s466, 8
          %s468 = scalar_lea.vmem [#allocation9], %s467
          %s470 = ssub.s32 128, 128
          %471 = vsyncadd %s465, %s470
          %s472 = smul.addr %s36, 2
          %s473 = sadd.s32 %s38, %s472
          %s474 = smul.addr %s473, 128
          %s475 = scalar_lea.hbm %s1, %s474
          %s477 = sshll.u32 %s468, 4
          %s478 = int_to_ptr.vmem [resolvable:$true] %s477
          %480 = dma.hbm_to_vmem [thread:$0]  %s475, 128, %s478, %s465
        $region64: #{tpu_custom_call.1} parent=55 // pred_fallthru
          _
        // Predicated region
        $region65: #{tpu_custom_call.1} parent=55 // pred_check
          %p481 = pneg %p128
        $region66: #{tpu_custom_call.1} parent=55 // pred_check_branch
          %483 = sbr.rel (%p481) target = $region68
        $region67: #{tpu_custom_call.1} parent=55 // pred_region
          %s484 = sand.u32 %s29, 1
          %s485 = scalar_lea.sflag [#allocation10], %s484
          %s486 = sand.u32 %s118, 1
          %s487 = smul.addr %s486, 32
          %s488 = scalar_lea.vmem [#allocation11], %s487
          %s489 = smul.u32 8, %s37
          %s491 = ssub.s32 512, 512
          %492 = vsyncadd %s485, %s491
          %s493 = smul.addr %s489, 2
          %s494 = sadd.s32 %s38, %s493
          %s495 = smul.addr %s36, 32
          %s496 = sadd.s32 %s494, %s495
          %s497 = smul.addr %s496, 64
          %s498 = scalar_lea.hbm %s2, %s497
          %s499 = sshll.u32 %s488, 4
          %s500 = int_to_ptr.vmem [resolvable:$true] %s499
          %505 = dma.hbm_to_vmem [thread:$0]  %s498, 512, %s500, %s485, 128, 64, 4
        $region68: #{tpu_custom_call.1} parent=55 // pred_fallthru
          _
      $region56: #{tpu_custom_call.1} parent=5 // pred_fallthru
        _
      %p506 = scmp.le.s32.totalorder 1, %s29
      %p507 = scmp.lt.s32.totalorder %s29, 9
      %p508 = pnand %p506, %p507
      %p509 = pneg %p508
      // Predicated region
      $region69: #{tpu_custom_call.1} parent=5 // pred_check
        _
      $region70: #{tpu_custom_call.1} parent=5 // pred_check_branch
        %511 = sbr.rel (%p508) target = $region72
      $region71: #{tpu_custom_call.1} parent=5 // pred_region
        %s512 = ssub.s32 %s29, 1
        %s513 = sand.u32 %s63, 1
        %s514 = scalar_lea.sflag [#allocation7], %s513
        %s515 = sand.u32 %s63, 1
        %s516 = smul.addr %s515, 8
        %s517 = scalar_lea.vmem [#allocation6], %s516
        // Predicated region
        $region73: #{tpu_custom_call.1} parent=71 // pred_check
          %p518 = pneg %p76
        $region74: #{tpu_custom_call.1} parent=71 // pred_check_branch
          %520 = sbr.rel (%p518) target = $region76
        $region75: #{tpu_custom_call.1} parent=71 // pred_region
          %521 = dma.done %s514, 128
        $region76: #{tpu_custom_call.1} parent=71 // pred_fallthru
          _
        %s522 = sand.u32 %s34, 1
        %s523 = scalar_lea.sflag [#allocation10], %s522
        %s524 = sand.u32 %s91, 1
        %s525 = smul.addr %s524, 8
        %s526 = scalar_lea.vmem [#allocation9], %s525
        // Predicated region
        $region77: #{tpu_custom_call.1} parent=71 // pred_check
          %p527 = pneg %p104
        $region78: #{tpu_custom_call.1} parent=71 // pred_check_branch
          %529 = sbr.rel (%p527) target = $region80
        $region79: #{tpu_custom_call.1} parent=71 // pred_region
          %530 = dma.done %s523, 128
        $region80: #{tpu_custom_call.1} parent=71 // pred_fallthru
          _
        %s531 = sand.u32 %s34, 1
        %s532 = scalar_lea.sflag [#allocation10], %s531
        %s533 = sand.u32 %s121, 1
        %s534 = smul.addr %s533, 32
        %s535 = scalar_lea.vmem [#allocation11], %s534
        // Predicated region
        $region81: #{tpu_custom_call.1} parent=71 // pred_check
          %p536 = pneg %p134
        $region82: #{tpu_custom_call.1} parent=71 // pred_check_branch
          %538 = sbr.rel (%p536) target = $region84
        $region83: #{tpu_custom_call.1} parent=71 // pred_region
          %539 = dma.done %s532, 512
        $region84: #{tpu_custom_call.1} parent=71 // pred_fallthru
          _
        // Predicated region
        $region85: #{tpu_custom_call.1} parent=71 // pred_check
          %p540 = pneg %p176
        $region86: #{tpu_custom_call.1} parent=71 // pred_check_branch
          %542 = sbr.rel (%p540) target = $region88
        $region87: #{tpu_custom_call.1} parent=71 // pred_region
          %543 = dma.done [#allocation13], 256
        $region88: #{tpu_custom_call.1} parent=71 // pred_fallthru
          _
        // Predicated region
        $region89: #{tpu_custom_call.1} parent=71 // pred_check
          %p544 = pneg %p197
        $region90: #{tpu_custom_call.1} parent=71 // pred_check_branch
          %546 = sbr.rel (%p544) target = $region92
        $region91: #{tpu_custom_call.1} parent=71 // pred_region
          %547 = dma.done [#allocation13], 256
        $region92: #{tpu_custom_call.1} parent=71 // pred_fallthru
          _
        %s548 = sand.u32 %s63, 1
        %s549 = scalar_lea.sflag [#allocation7], %s548
        %s550 = sand.u32 %s63, 1
        %s551 = smul.addr %s550, 8
        %s552 = scalar_lea.vmem [#allocation6], %s551
        %p553 = pneg %p76
        %p554 = pneg %p73
        %s555 = sand.u32 %s34, 1
        %s556 = scalar_lea.sflag [#allocation10], %s555
        %s557 = sand.u32 %s91, 1
        %s558 = smul.addr %s557, 8
        %s559 = scalar_lea.vmem [#allocation9], %s558
        %p560 = pneg %p104
        %p561 = pneg %p101
        %s562 = sand.u32 %s34, 1
        %s563 = scalar_lea.sflag [#allocation10], %s562
        %s564 = sand.u32 %s121, 1
        %s565 = smul.addr %s564, 32
        %s566 = scalar_lea.vmem [#allocation11], %s565
        %p567 = pneg %p134
        %p568 = pneg %p131
        %p569 = pneg %p155
        %p570 = pneg %p152
        %p571 = pneg %p176
        %p572 = pneg %p173
        %p573 = pneg %p197
        %p574 = pneg %p194
        %p575 = pneg %p218
        %p576 = pneg %p215
        %p577 = pneg %p239
        %p578 = pneg %p236
        %p579 = pneg %p260
        %p580 = pneg %p257
        %p581 = pneg %p281
        %p582 = pneg %p278
        %p583 = pneg %p302
        %p584 = pneg %p299
        %p585 = pneg %p323
        %p586 = pneg %p320
        %p587 = pneg %p344
        %p588 = pneg %p341
        %p589 = pneg %p372
        %p590 = pneg %p369
        %s591 = sand.u32 %s359, 1
        %s592 = scalar_lea.sflag [#allocation8], %s591
        %s593 = sand.u32 %s359, 1
        %s594 = smul.addr %s593, 8
        %s595 = scalar_lea.vmem [#allocation15], %s594
        %s596 = smul.u32 8, %s40
        %p598 = scmp.eq.s32.totalorder %s41, 0
        // Predicated region
        $region93: #{tpu_custom_call.1} parent=71 // pred_check
          %p599 = pneg %p598
        $region94: #{tpu_custom_call.1} parent=71 // pred_check_branch
          %601 = sbr.rel (%p599) target = $region96
        $region95: #{tpu_custom_call.1} parent=71 // pred_region
          %v602 = vld [vmem:[%s517] sm:$0xff]
          %v603 = vld [vmem:[%s9] sm:$0x1]
          %v604 = vld [vmem:[%s10] sm:$0x1]
          %vm605 = vcmask 261120
          %v606 = vsel %vm605, %v602, 0.0
          %607 = vadd.xlane.f32.xlu0 %v606
          %v608 = vpop.xlane.xlu0 %607
          %v609 = vrcp.pop 32.0
          %v610 = vmul.f32 %v608, %v609
          %v611 = vsub.f32 %v602, %v610
          %v612 = vmul.f32 %v611, %v611
          %v613 = vsel %vm605, %v612, 0.0
          %614 = vadd.xlane.f32.xlu0 %v613
          %v615 = vpop.xlane.xlu0 %614
          %v616 = vmul.f32 %v615, %v609
          %v617 = vadd.f32 %v616, 1e-05
          %v618 = vrsqrt.pop %v617
          %v619 = vmul.f32 %v611, %v618
          %v621 = vlaneseq
          %v622 = vshrl.u32 %v621, 7
          %v623 = vsub.s32 0, %v622
          %v624 = vrot.slane %v603, %v623
          %v626 = vmul.f32 %v619, %v624
          %v628 = vlaneseq
          %v629 = vshrl.u32 %v628, 7
          %v630 = vsub.s32 0, %v629
          %v631 = vrot.slane %v604, %v630
          %v633 = vadd.f32 %v626, %v631
          %v634 = vpack.c.bf16 %v633, %v633
          %v635 = vld [vmem:[%s3] sm:$0xf]
          %v636 = vld [vmem:[%s3 + $0x4] sm:$0xf]
          %v637 = vld [vmem:[%s3 + $0x8] sm:$0xf]
          %v638 = vld [vmem:[%s3 + $0xc] sm:$0xf]
          %v643 = vunpack.c.l.b16 %v635
          %v644 = vunpack.c.l.b16 %v636
          %v645 = vunpack.c.l.b16 %v637
          %v646 = vunpack.c.l.b16 %v638
          %v647 = vpack.c.b16 %v644, %v643
          %v648 = vpack.c.b16 %v646, %v645
          %v652 = vsel %vm605, %v634, 0
          %654 = vmatprep.subr.bf16.mxu0 0
          %655 = vmatpush1.bf16.msra.mxu0 %v647
          %656 = vmatprep.subr.bf16.mxu0 0
          %657 = vmatpush1.bf16.msra.mxu0 %v648
          %658 = vmatprep.subr.bf16.mxu0 0
          %659 = vmatpush1.bf16.msra.mxu0 0
          %660 = vmatprep.subr.bf16.mxu0 0
          %661 = vmatpush1.bf16.msra.mxu0 0
          %662 = vmatprep.subr.bf16.mxu0 0
          %663 = vmatpush1.bf16.msra.mxu0 0
          %664 = vmatprep.subr.bf16.mxu0 0
          %665 = vmatpush1.bf16.msra.mxu0 0
          %666 = vmatprep.subr.bf16.mxu0 0
          %667 = vmatpush1.bf16.msra.mxu0 0
          %668 = vmatprep.subr.bf16.mxu0 0
          %669 = vmatpush1.bf16.msra.mxu0 0
          %670 = vmatprep.subr.bf16.mxu0 0
          %671 = vmatpush1.bf16.msra.mxu0 0
          %672 = vmatprep.subr.bf16.mxu0 0
          %673 = vmatpush1.bf16.msra.mxu0 0
          %674 = vmatprep.subr.bf16.mxu0 0
          %675 = vmatpush1.bf16.msra.mxu0 0
          %676 = vmatprep.subr.bf16.mxu0 0
          %677 = vmatpush1.bf16.msra.mxu0 0
          %678 = vmatprep.subr.bf16.mxu0 0
          %679 = vmatpush1.bf16.msra.mxu0 0
          %680 = vmatprep.subr.bf16.mxu0 0
          %681 = vmatpush1.bf16.msra.mxu0 0
          %682 = vmatprep.subr.bf16.mxu0 0
          %683 = vmatpush1.bf16.msra.mxu0 0
          %684 = vmatprep.subr.bf16.mxu0 0
          %685 = vmatpush1.bf16.msra.mxu0 0
          %686 = vmatprep.mubr.bf16.mxu0 0
          %687 = vmatmul.mubr.bf16.gmra.mrb[0].mxu0 %v652
          %v688 = vpop.f32.mrb[0].mxu0
          %v689 = vadd.f32 0.0, %v688
          %v690 = vpop.f32.mrb[0].mxu0
          %v691 = vpop.f32.mrb[0].mxu0
          %v692 = vpop.f32.mrb[0].mxu0
          %693 = vdwg.mxu0
          %v694 = vpack.c.bf16 %v689, %v689
          %vm695 = vcmask 257024
          %696 = vst.msk [vmem:[#allocation2] sm:$0xf] %vm695, %v694
          %vm697 = vcmask 7168
          %698 = vst.msk [vmem:[#allocation3] sm:$0xff] %vm697, -inf
          %699 = vst.msk [vmem:[#allocation3 + $0x8] sm:$0xff] %vm697, -inf
          %700 = vst.msk [vmem:[#allocation3 + $0x10] sm:$0xff] %vm697, -inf
          %701 = vst.msk [vmem:[#allocation3 + $0x18] sm:$0xff] %vm697, -inf
          %702 = vst.msk [vmem:[#allocation4] sm:$0xff] %vm697, 0.0
          %703 = vst.msk [vmem:[#allocation4 + $0x8] sm:$0xff] %vm697, 0.0
          %704 = vst.msk [vmem:[#allocation4 + $0x10] sm:$0xff] %vm697, 0.0
          %705 = vst.msk [vmem:[#allocation4 + $0x18] sm:$0xff] %vm697, 0.0
          %vm706 = vcmask 64512
          %707 = vst.msk [vmem:[#allocation5] sm:$0xff] %vm706, 0.0
          %708 = vst.msk [vmem:[#allocation5 + $0x8] sm:$0xff] %vm706, 0.0
          %709 = vst.msk [vmem:[#allocation5 + $0x10] sm:$0xff] %vm706, 0.0
          %710 = vst.msk [vmem:[#allocation5 + $0x18] sm:$0xff] %vm706, 0.0
        $region96: #{tpu_custom_call.1} parent=71 // pred_fallthru
          _
        %v711 = vld [vmem:[%s526] sm:$0xff]
        %v712 = vld [vmem:[%s9] sm:$0x1]
        %v713 = vld [vmem:[%s10] sm:$0x1]
        %vm714 = vcmask 261120
        %v715 = vsel %vm714, %v711, 0.0
        %716 = vadd.xlane.f32.xlu0 %v715
        %v717 = vpop.xlane.xlu0 %716
        %v718 = vrcp.pop 32.0
        %v719 = vmul.f32 %v717, %v718
        %v720 = vsub.f32 %v711, %v719
        %v721 = vmul.f32 %v720, %v720
        %v722 = vsel %vm714, %v721, 0.0
        %723 = vadd.xlane.f32.xlu0 %v722
        %v724 = vpop.xlane.xlu0 %723
        %v725 = vmul.f32 %v724, %v718
        %v726 = vadd.f32 %v725, 1e-05
        %v727 = vrsqrt.pop %v726
        %v728 = vmul.f32 %v720, %v727
        %v730 = vlaneseq
        %v731 = vshrl.u32 %v730, 7
        %v732 = vsub.s32 0, %v731
        %v733 = vrot.slane %v712, %v732
        %v735 = vmul.f32 %v728, %v733
        %v737 = vlaneseq
        %v738 = vshrl.u32 %v737, 7
        %v739 = vsub.s32 0, %v738
        %v740 = vrot.slane %v713, %v739
        %v742 = vadd.f32 %v735, %v740
        %v743 = vpack.c.bf16 %v742, %v742
        %v744 = vld [vmem:[#allocation12] sm:$0xf]
        %v745 = vld [vmem:[#allocation12 + $0x4] sm:$0xf]
        %v746 = vld [vmem:[#allocation12 + $0x8] sm:$0xf]
        %v747 = vld [vmem:[#allocation12 + $0xc] sm:$0xf]
        %v752 = vunpack.c.l.b16 %v744
        %v753 = vunpack.c.l.b16 %v745
        %v754 = vunpack.c.l.b16 %v746
        %v755 = vunpack.c.l.b16 %v747
        %v756 = vpack.c.b16 %v753, %v752
        %v757 = vpack.c.b16 %v755, %v754
        %v761 = vsel %vm714, %v743, 0
        %763 = vmatprep.subr.bf16.mxu0 0
        %764 = vmatpush1.bf16.msra.mxu0 %v756
        %765 = vmatprep.subr.bf16.mxu0 0
        %766 = vmatpush1.bf16.msra.mxu0 %v757
        %767 = vmatprep.subr.bf16.mxu0 0
        %768 = vmatpush1.bf16.msra.mxu0 0
        %769 = vmatprep.subr.bf16.mxu0 0
        %770 = vmatpush1.bf16.msra.mxu0 0
        %771 = vmatprep.subr.bf16.mxu0 0
        %772 = vmatpush1.bf16.msra.mxu0 0
        %773 = vmatprep.subr.bf16.mxu0 0
        %774 = vmatpush1.bf16.msra.mxu0 0
        %775 = vmatprep.subr.bf16.mxu0 0
        %776 = vmatpush1.bf16.msra.mxu0 0
        %777 = vmatprep.subr.bf16.mxu0 0
        %778 = vmatpush1.bf16.msra.mxu0 0
        %779 = vmatprep.subr.bf16.mxu0 0
        %780 = vmatpush1.bf16.msra.mxu0 0
        %781 = vmatprep.subr.bf16.mxu0 0
        %782 = vmatpush1.bf16.msra.mxu0 0
        %783 = vmatprep.subr.bf16.mxu0 0
        %784 = vmatpush1.bf16.msra.mxu0 0
        %785 = vmatprep.subr.bf16.mxu0 0
        %786 = vmatpush1.bf16.msra.mxu0 0
        %787 = vmatprep.subr.bf16.mxu0 0
        %788 = vmatpush1.bf16.msra.mxu0 0
        %789 = vmatprep.subr.bf16.mxu0 0
        %790 = vmatpush1.bf16.msra.mxu0 0
        %791 = vmatprep.subr.bf16.mxu0 0
        %792 = vmatpush1.bf16.msra.mxu0 0
        %793 = vmatprep.subr.bf16.mxu0 0
        %794 = vmatpush1.bf16.msra.mxu0 0
        %795 = vmatprep.mubr.bf16.mxu0 0
        %796 = vmatmul.mubr.bf16.gmra.mrb[0].mxu0 %v761
        %v797 = vpop.f32.mrb[0].mxu0
        %v798 = vadd.f32 0.0, %v797
        %v799 = vpop.f32.mrb[0].mxu0
        %v800 = vpop.f32.mrb[0].mxu0
        %v801 = vpop.f32.mrb[0].mxu0
        %802 = vdwg.mxu0
        %v803 = vpack.c.bf16 %v798, %v798
        %v804 = vld [vmem:[#allocation14] sm:$0xf]
        %v805 = vld [vmem:[#allocation14 + $0x4] sm:$0xf]
        %v806 = vld [vmem:[#allocation14 + $0x8] sm:$0xf]
        %v807 = vld [vmem:[#allocation14 + $0xc] sm:$0xf]
        %v812 = vunpack.c.l.b16 %v804
        %v813 = vunpack.c.l.b16 %v805
        %v814 = vunpack.c.l.b16 %v806
        %v815 = vunpack.c.l.b16 %v807
        %v816 = vpack.c.b16 %v813, %v812
        %v817 = vpack.c.b16 %v815, %v814
        %820 = vmatprep.subr.bf16.mxu0 0
        %821 = vmatpush1.bf16.msra.mxu0 %v816
        %822 = vmatprep.subr.bf16.mxu0 0
        %823 = vmatpush1.bf16.msra.mxu0 %v817
        %824 = vmatprep.subr.bf16.mxu0 0
        %825 = vmatpush1.bf16.msra.mxu0 0
        %826 = vmatprep.subr.bf16.mxu0 0
        %827 = vmatpush1.bf16.msra.mxu0 0
        %828 = vmatprep.subr.bf16.mxu0 0
        %829 = vmatpush1.bf16.msra.mxu0 0
        %830 = vmatprep.subr.bf16.mxu0 0
        %831 = vmatpush1.bf16.msra.mxu0 0
        %832 = vmatprep.subr.bf16.mxu0 0
        %833 = vmatpush1.bf16.msra.mxu0 0
        %834 = vmatprep.subr.bf16.mxu0 0
        %835 = vmatpush1.bf16.msra.mxu0 0
        %836 = vmatprep.subr.bf16.mxu0 0
        %837 = vmatpush1.bf16.msra.mxu0 0
        %838 = vmatprep.subr.bf16.mxu0 0
        %839 = vmatpush1.bf16.msra.mxu0 0
        %840 = vmatprep.subr.bf16.mxu0 0
        %841 = vmatpush1.bf16.msra.mxu0 0
        %842 = vmatprep.subr.bf16.mxu0 0
        %843 = vmatpush1.bf16.msra.mxu0 0
        %844 = vmatprep.subr.bf16.mxu0 0
        %845 = vmatpush1.bf16.msra.mxu0 0
        %846 = vmatprep.subr.bf16.mxu0 0
        %847 = vmatpush1.bf16.msra.mxu0 0
        %848 = vmatprep.subr.bf16.mxu0 0
        %849 = vmatpush1.bf16.msra.mxu0 0
        %850 = vmatprep.subr.bf16.mxu0 0
        %851 = vmatpush1.bf16.msra.mxu0 0
        %852 = vmatprep.mubr.bf16.mxu0 0
        %853 = vmatmul.mubr.bf16.gmra.mrb[0].mxu0 %v761
        %v854 = vpop.f32.mrb[0].mxu0
        %v855 = vadd.f32 0.0, %v854
        %v856 = vpop.f32.mrb[0].mxu0
        %v857 = vpop.f32.mrb[0].mxu0
        %v858 = vpop.f32.mrb[0].mxu0
        %859 = vdwg.mxu0
        %v860 = vpack.c.bf16 %v855, %v855
        %v861 = vld [vmem:[%s535] sm:$0xf]
        %v862 = vld [vmem:[%s535 + $0x4] sm:$0xf]
        %v863 = vld [vmem:[%s535 + $0x8] sm:$0xf]
        %v864 = vld [vmem:[%s535 + $0xc] sm:$0xf]
        %v865 = vld [vmem:[%s535 + $0x10] sm:$0xf]
        %v866 = vld [vmem:[%s535 + $0x14] sm:$0xf]
        %v867 = vld [vmem:[%s535 + $0x18] sm:$0xf]
        %v868 = vld [vmem:[%s535 + $0x1c] sm:$0xf]
        %v869 = vunpack.c.l.bf16 %v861
        %v870 = vunpack.c.l.bf16 %v862
        %v871 = vunpack.c.l.bf16 %v863
        %v872 = vunpack.c.l.bf16 %v864
        %v873 = vunpack.c.l.bf16 %v865
        %v874 = vunpack.c.l.bf16 %v866
        %v875 = vunpack.c.l.bf16 %v867
        %v876 = vunpack.c.l.bf16 %v868
        %v877 = vld [vmem:[%s11] sm:$0x1]
        %v878 = vld [vmem:[%s12] sm:$0x1]
        %vm879 = vcmask 130048
        %v880 = vsel %vm879, %v869, 0.0
        %881 = vadd.xlane.f32.xlu0 %v880
        %v882 = vpop.xlane.xlu0 %881
        %v883 = vsel %vm879, %v870, 0.0
        %884 = vadd.xlane.f32.xlu0 %v883
        %v885 = vpop.xlane.xlu0 %884
        %v886 = vsel %vm879, %v871, 0.0
        %887 = vadd.xlane.f32.xlu0 %v886
        %v888 = vpop.xlane.xlu0 %887
        %v889 = vsel %vm879, %v872, 0.0
        %890 = vadd.xlane.f32.xlu0 %v889
        %v891 = vpop.xlane.xlu0 %890
        %v892 = vsel %vm879, %v873, 0.0
        %893 = vadd.xlane.f32.xlu0 %v892
        %v894 = vpop.xlane.xlu0 %893
        %v895 = vsel %vm879, %v874, 0.0
        %896 = vadd.xlane.f32.xlu0 %v895
        %v897 = vpop.xlane.xlu0 %896
        %v898 = vsel %vm879, %v875, 0.0
        %899 = vadd.xlane.f32.xlu0 %v898
        %v900 = vpop.xlane.xlu0 %899
        %v901 = vsel %vm879, %v876, 0.0
        %902 = vadd.xlane.f32.xlu0 %v901
        %v903 = vpop.xlane.xlu0 %902
        %v904 = vrcp.pop 16.0
        %v905 = vmul.f32 %v882, %v904
        %v906 = vmul.f32 %v885, %v904
        %v907 = vmul.f32 %v888, %v904
        %v908 = vmul.f32 %v891, %v904
        %v909 = vmul.f32 %v894, %v904
        %v910 = vmul.f32 %v897, %v904
        %v911 = vmul.f32 %v900, %v904
        %v912 = vmul.f32 %v903, %v904
        %v913 = vsub.f32 %v869, %v905
        %v914 = vsub.f32 %v870, %v906
        %v915 = vsub.f32 %v871, %v907
        %v916 = vsub.f32 %v872, %v908
        %v917 = vsub.f32 %v873, %v909
        %v918 = vsub.f32 %v874, %v910
        %v919 = vsub.f32 %v875, %v911
        %v920 = vsub.f32 %v876, %v912
        %v921 = vmul.f32 %v913, %v913
        %v922 = vmul.f32 %v914, %v914
        %v923 = vmul.f32 %v915, %v915
        %v924 = vmul.f32 %v916, %v916
        %v925 = vmul.f32 %v917, %v917
        %v926 = vmul.f32 %v918, %v918
        %v927 = vmul.f32 %v919, %v919
        %v928 = vmul.f32 %v920, %v920
        %v929 = vsel %vm879, %v921, 0.0
        %930 = vadd.xlane.f32.xlu0 %v929
        %v931 = vpop.xlane.xlu0 %930
        %v932 = vsel %vm879, %v922, 0.0
        %933 = vadd.xlane.f32.xlu0 %v932
        %v934 = vpop.xlane.xlu0 %933
        %v935 = vsel %vm879, %v923, 0.0
        %936 = vadd.xlane.f32.xlu0 %v935
        %v937 = vpop.xlane.xlu0 %936
        %v938 = vsel %vm879, %v924, 0.0
        %939 = vadd.xlane.f32.xlu0 %v938
        %v940 = vpop.xlane.xlu0 %939
        %v941 = vsel %vm879, %v925, 0.0
        %942 = vadd.xlane.f32.xlu0 %v941
        %v943 = vpop.xlane.xlu0 %942
        %v944 = vsel %vm879, %v926, 0.0
        %945 = vadd.xlane.f32.xlu0 %v944
        %v946 = vpop.xlane.xlu0 %945
        %v947 = vsel %vm879, %v927, 0.0
        %948 = vadd.xlane.f32.xlu0 %v947
        %v949 = vpop.xlane.xlu0 %948
        %v950 = vsel %vm879, %v928, 0.0
        %951 = vadd.xlane.f32.xlu0 %v950
        %v952 = vpop.xlane.xlu0 %951
        %v953 = vmul.f32 %v931, %v904
        %v954 = vmul.f32 %v934, %v904
        %v955 = vmul.f32 %v937, %v904
        %v956 = vmul.f32 %v940, %v904
        %v957 = vmul.f32 %v943, %v904
        %v958 = vmul.f32 %v946, %v904
        %v959 = vmul.f32 %v949, %v904
        %v960 = vmul.f32 %v952, %v904
        %v961 = vadd.f32 %v953, 1e-05
        %v962 = vadd.f32 %v954, 1e-05
        %v963 = vadd.f32 %v955, 1e-05
        %v964 = vadd.f32 %v956, 1e-05
        %v965 = vadd.f32 %v957, 1e-05
        %v966 = vadd.f32 %v958, 1e-05
        %v967 = vadd.f32 %v959, 1e-05
        %v968 = vadd.f32 %v960, 1e-05
        %v969 = vrsqrt.pop %v961
        %v970 = vrsqrt.pop %v962
        %v971 = vrsqrt.pop %v963
        %v972 = vrsqrt.pop %v964
        %v973 = vrsqrt.pop %v965
        %v974 = vrsqrt.pop %v966
        %v975 = vrsqrt.pop %v967
        %v976 = vrsqrt.pop %v968
        %v977 = vmul.f32 %v913, %v969
        %v978 = vmul.f32 %v914, %v970
        %v979 = vmul.f32 %v915, %v971
        %v980 = vmul.f32 %v916, %v972
        %v981 = vmul.f32 %v917, %v973
        %v982 = vmul.f32 %v918, %v974
        %v983 = vmul.f32 %v919, %v975
        %v984 = vmul.f32 %v920, %v976
        %v986 = vlaneseq
        %v987 = vshrl.u32 %v986, 7
        %v988 = vsub.s32 0, %v987
        %v989 = vrot.slane %v877, %v988
        %v991 = vmul.f32 %v977, %v989
        %v992 = vmul.f32 %v978, %v989
        %v993 = vmul.f32 %v979, %v989
        %v994 = vmul.f32 %v980, %v989
        %v995 = vmul.f32 %v981, %v989
        %v996 = vmul.f32 %v982, %v989
        %v997 = vmul.f32 %v983, %v989
        %v998 = vmul.f32 %v984, %v989
        %v1000 = vlaneseq
        %v1001 = vshrl.u32 %v1000, 7
        %v1002 = vsub.s32 0, %v1001
        %v1003 = vrot.slane %v878, %v1002
        %v1005 = vadd.f32 %v991, %v1003
        %v1006 = vadd.f32 %v992, %v1003
        %v1007 = vadd.f32 %v993, %v1003
        %v1008 = vadd.f32 %v994, %v1003
        %v1009 = vadd.f32 %v995, %v1003
        %v1010 = vadd.f32 %v996, %v1003
        %v1011 = vadd.f32 %v997, %v1003
        %v1012 = vadd.f32 %v998, %v1003
        %v1013 = vpack.c.bf16 %v1006, %v1005
        %v1014 = vpack.c.bf16 %v1008, %v1007
        %v1015 = vpack.c.bf16 %v1010, %v1009
        %v1016 = vpack.c.bf16 %v1012, %v1011
        %v1017 = vld [vmem:[%s8] sm:$0xf]
        %v1018 = vld [vmem:[%s8 + $0x4] sm:$0xf]
        %v1021 = vunpack.c.l.b16 %v1017
        %v1022 = vunpack.c.l.b16 %v1018
        %v1023 = vpack.c.b16 %v1022, %v1021
        %v1026 = vsel %vm879, %v1013, 0
        %v1029 = vsel %vm879, %v1014, 0
        %v1032 = vsel %vm879, %v1015, 0
        %v1035 = vsel %vm879, %v1016, 0
        %1037 = vmatprep.subr.bf16.mxu0 0
        %1038 = vmatpush1.bf16.msra.mxu0 %v1023
        %1039 = vmatprep.subr.bf16.mxu0 0
        %1040 = vmatpush1.bf16.msra.mxu0 0
        %1041 = vmatprep.subr.bf16.mxu0 0
        %1042 = vmatpush1.bf16.msra.mxu0 0
        %1043 = vmatprep.subr.bf16.mxu0 0
        %1044 = vmatpush1.bf16.msra.mxu0 0
        %1045 = vmatprep.subr.bf16.mxu0 0
        %1046 = vmatpush1.bf16.msra.mxu0 0
        %1047 = vmatprep.subr.bf16.mxu0 0
        %1048 = vmatpush1.bf16.msra.mxu0 0
        %1049 = vmatprep.subr.bf16.mxu0 0
        %1050 = vmatpush1.bf16.msra.mxu0 0
        %1051 = vmatprep.subr.bf16.mxu0 0
        %1052 = vmatpush1.bf16.msra.mxu0 0
        %1053 = vmatprep.subr.bf16.mxu0 0
        %1054 = vmatpush1.bf16.msra.mxu0 0
        %1055 = vmatprep.subr.bf16.mxu0 0
        %1056 = vmatpush1.bf16.msra.mxu0 0
        %1057 = vmatprep.subr.bf16.mxu0 0
        %1058 = vmatpush1.bf16.msra.mxu0 0
        %1059 = vmatprep.subr.bf16.mxu0 0
        %1060 = vmatpush1.bf16.msra.mxu0 0
        %1061 = vmatprep.subr.bf16.mxu0 0
        %1062 = vmatpush1.bf16.msra.mxu0 0
        %1063 = vmatprep.subr.bf16.mxu0 0
        %1064 = vmatpush1.bf16.msra.mxu0 0
        %1065 = vmatprep.subr.bf16.mxu0 0
        %1066 = vmatpush1.bf16.msra.mxu0 0
        %1067 = vmatprep.subr.bf16.mxu0 0
        %1068 = vmatpush1.bf16.msra.mxu0 0
        %1069 = vmatprep.mubr.bf16.mxu0 0
        %1070 = vmatmul.mubr.bf16.gmra.mrb[0].mxu0 %v1026
        %v1071 = vpop.f32.mrb[0].mxu0
        %v1072 = vadd.f32 0.0, %v1071
        %v1073 = vpop.f32.mrb[0].mxu0
        %v1074 = vpop.f32.mrb[0].mxu0
        %v1075 = vadd.f32 0.0, %v1074
        %v1076 = vpop.f32.mrb[0].mxu0
        %1077 = vmatprep.mubr.bf16.mxu0 0
        %1078 = vmatmul.mubr.bf16.gmra.mrb[0].mxu0 %v1029
        %v1079 = vpop.f32.mrb[0].mxu0
        %v1080 = vadd.f32 0.0, %v1079
        %v1081 = vpop.f32.mrb[0].mxu0
        %v1082 = vpop.f32.mrb[0].mxu0
        %v1083 = vadd.f32 0.0, %v1082
        %v1084 = vpop.f32.mrb[0].mxu0
        %1085 = vmatprep.mubr.bf16.mxu0 0
        %1086 = vmatmul.mubr.bf16.gmra.mrb[0].mxu0 %v1032
        %v1087 = vpop.f32.mrb[0].mxu0
        %v1088 = vadd.f32 0.0, %v1087
        %v1089 = vpop.f32.mrb[0].mxu0
        %v1090 = vpop.f32.mrb[0].mxu0
        %v1091 = vadd.f32 0.0, %v1090
        %v1092 = vpop.f32.mrb[0].mxu0
        %1093 = vmatprep.mubr.bf16.mxu0 0
        %1094 = vmatmul.mubr.bf16.gmra.mrb[0].mxu0 %v1035
        %v1095 = vpop.f32.mrb[0].mxu0
        %v1096 = vadd.f32 0.0, %v1095
        %v1097 = vpop.f32.mrb[0].mxu0
        %v1098 = vpop.f32.mrb[0].mxu0
        %v1099 = vadd.f32 0.0, %v1098
        %v1100 = vpop.f32.mrb[0].mxu0
        %1101 = vdwg.mxu0
        %v1102 = vld [vmem:[#allocation2] sm:$0xf]
        %1111 = vset.pattern.permute.xlu0 0
        %1112 = vperm.xlu0 %1111, %v1072
        %v1113 = vpop.permute.xlu0 %1112
        %1114 = vset.pattern.permute.xlu0 0
        %1115 = vperm.xlu0 %1114, %v1075
        %v1116 = vpop.permute.xlu0 %1115
        %1117 = vset.pattern.permute.xlu0 0
        %1118 = vperm.xlu0 %1117, %v1080
        %v1119 = vpop.permute.xlu0 %1118
        %1120 = vset.pattern.permute.xlu0 0
        %1121 = vperm.xlu0 %1120, %v1083
        %v1122 = vpop.permute.xlu0 %1121
        %1123 = vset.pattern.permute.xlu0 0
        %1124 = vperm.xlu0 %1123, %v1088
        %v1125 = vpop.permute.xlu0 %1124
        %1126 = vset.pattern.permute.xlu0 0
        %1127 = vperm.xlu0 %1126, %v1091
        %v1128 = vpop.permute.xlu0 %1127
        %1129 = vset.pattern.permute.xlu0 0
        %1130 = vperm.xlu0 %1129, %v1096
        %v1131 = vpop.permute.xlu0 %1130
        %1132 = vset.pattern.permute.xlu0 0
        %1133 = vperm.xlu0 %1132, %v1099
        %v1134 = vpop.permute.xlu0 %1133
        %v1135 = vlaneseq
        %v1136 = vand.u32 %v1135, 127
        %v1137 = vlaneseq
        %v1138 = vshrl.u32 %v1137, 7
        %v1139 = vsub.s32 %v1136, %v1138
        %v1140 = vrot.slane %v1113, %v1139
        %v1141 = vlaneseq
        %v1142 = vshrl.u32 %v1141, 7
        %v1143 = vsub.s32 %v1136, %v1142
        %v1144 = vrot.slane %v1116, %v1143
        %v1145 = vlaneseq
        %v1146 = vshrl.u32 %v1145, 7
        %v1147 = vsub.s32 %v1136, %v1146
        %v1148 = vrot.slane %v1119, %v1147
        %v1149 = vlaneseq
        %v1150 = vshrl.u32 %v1149, 7
        %v1151 = vsub.s32 %v1136, %v1150
        %v1152 = vrot.slane %v1122, %v1151
        %v1153 = vlaneseq
        %v1154 = vshrl.u32 %v1153, 7
        %v1155 = vsub.s32 %v1136, %v1154
        %v1156 = vrot.slane %v1125, %v1155
        %v1157 = vlaneseq
        %v1158 = vshrl.u32 %v1157, 7
        %v1159 = vsub.s32 %v1136, %v1158
        %v1160 = vrot.slane %v1128, %v1159
        %v1161 = vlaneseq
        %v1162 = vshrl.u32 %v1161, 7
        %v1163 = vsub.s32 %v1136, %v1162
        %v1164 = vrot.slane %v1131, %v1163
        %v1165 = vlaneseq
        %v1166 = vshrl.u32 %v1165, 7
        %v1167 = vsub.s32 %v1136, %v1166
        %v1168 = vrot.slane %v1134, %v1167
        %vm1169 = vcmask 1041409
        %v1170 = vsel %vm1169, %v1144, %v1140
        %vm1171 = vcmask 1042434
        %v1172 = vsel %vm1171, %v1148, %v1170
        %vm1173 = vcmask 1043459
        %v1174 = vsel %vm1173, %v1152, %v1172
        %vm1175 = vcmask 1044484
        %v1176 = vsel %vm1175, %v1156, %v1174
        %vm1177 = vcmask 1045509
        %v1178 = vsel %vm1177, %v1160, %v1176
        %vm1179 = vcmask 1046534
        %v1180 = vsel %vm1179, %v1164, %v1178
        %vm1181 = vcmask 1047559
        %v1182 = vsel %vm1181, %v1168, %v1180
        %vm1184 = vcmask 64512
        %v1186 = vsel %vm1184, %v1102, 0
        %v1189 = vsel %vm1184, %v803, 0
        %1191 = vmatprep.subr.bf16.mxu0 0
        %1192 = vmatpush1.bf16.xpose.msra.mxu0 %v1189
        %1193 = vmatprep.subr.bf16.mxu0 0
        %1194 = vmatpush1.bf16.xpose.msra.mxu0 0
        %1195 = vmatprep.subr.bf16.mxu0 0
        %1196 = vmatpush1.bf16.xpose.msra.mxu0 0
        %1197 = vmatprep.subr.bf16.mxu0 0
        %1198 = vmatpush1.bf16.xpose.msra.mxu0 0
        %1199 = vmatprep.subr.bf16.mxu0 0
        %1200 = vmatpush1.bf16.xpose.msra.mxu0 0
        %1201 = vmatprep.subr.bf16.mxu0 0
        %1202 = vmatpush1.bf16.xpose.msra.mxu0 0
        %1203 = vmatprep.subr.bf16.mxu0 0
        %1204 = vmatpush1.bf16.xpose.msra.mxu0 0
        %1205 = vmatprep.subr.bf16.mxu0 0
        %1206 = vmatpush1.bf16.xpose.msra.mxu0 0
        %1207 = vmatprep.subr.bf16.mxu0 0
        %1208 = vmatpush1.bf16.xpose.msra.mxu0 0
        %1209 = vmatprep.subr.bf16.mxu0 0
        %1210 = vmatpush1.bf16.xpose.msra.mxu0 0
        %1211 = vmatprep.subr.bf16.mxu0 0
        %1212 = vmatpush1.bf16.xpose.msra.mxu0 0
        %1213 = vmatprep.subr.bf16.mxu0 0
        %1214 = vmatpush1.bf16.xpose.msra.mxu0 0
        %1215 = vmatprep.subr.bf16.mxu0 0
        %1216 = vmatpush1.bf16.xpose.msra.mxu0 0
        %1217 = vmatprep.subr.bf16.mxu0 0
        %1218 = vmatpush1.bf16.xpose.msra.mxu0 0
        %1219 = vmatprep.subr.bf16.mxu0 0
        %1220 = vmatpush1.bf16.xpose.msra.mxu0 0
        %1221 = vmatprep.subr.bf16.mxu0 0
        %1222 = vmatpush1.bf16.xpose.msra.mxu0 0
        %1223 = vmatprep.mubr.bf16.mxu0 0
        %1224 = vmatmul.mubr.bf16.gmra.mrb[0].mxu0 %v1186
        %v1225 = vpop.f32.mrb[0].mxu0
        %v1226 = vadd.f32 %v1182, %v1225
        %v1227 = vpop.f32.mrb[0].mxu0
        %v1228 = vpop.f32.mrb[0].mxu0
        %v1229 = vpop.f32.mrb[0].mxu0
        %1230 = vdwg.mxu0
        %v1231 = vld [vmem:[#allocation3] sm:$0xff]
        %v1232 = vsel %vm1184, %v1226, -inf
        %1233 = vmax.xlane.f32.xlu0 %v1232
        %v1234 = vpop.xlane.xlu0 %1233
        %v1235 = vmax.f32 %v1231, %v1234
        %v1236 = vsub.f32 %v1231, %v1235
        %v1237 = vmul.f32 %v1236, 1.442695
        %v1238 = vpow.pop %v1237
        %1240 = vset.pattern.permute.xlu0 0
        %1241 = vperm.xlu0 %1240, %v1235
        %v1242 = vpop.permute.xlu0 %1241
        %v1244 = vsub.f32 %v1226, %v1242
        %v1245 = vmul.f32 %v1244, 1.442695
        %v1246 = vpow.pop %v1245
        %v1247 = vld [vmem:[#allocation4] sm:$0xff]
        %v1248 = vmul.f32 %v1238, %v1247
        %v1249 = vsel %vm1184, %v1246, 0.0
        %1250 = vadd.xlane.f32.xlu0 %v1249
        %v1251 = vpop.xlane.xlu0 %1250
        %v1252 = vadd.f32 %v1248, %v1251
        %vm1253 = vcmask 7168
        %1254 = vst.msk [vmem:[#allocation4] sm:$0xff] %vm1253, %v1252
        %v1255 = vld [vmem:[#allocation5] sm:$0xff]
        %1257 = vset.pattern.permute.xlu0 0
        %1258 = vperm.xlu0 %1257, %v1238
        %v1259 = vpop.permute.xlu0 %1258
        %v1261 = vmul.f32 %v1259, %v1255
        %v1262 = vpack.c.bf16 %v1246, %v1246
        %v1264 = vsel %vm1184, %v1262, 0
        %vm1266 = vcmask 1043456
        %v1268 = vsel %vm1266, %v860, 0
        %1270 = vmatprep.subr.bf16.mxu0 0
        %1271 = vmatpush1.bf16.msra.mxu0 %v1268
        %1272 = vmatprep.subr.bf16.mxu0 0
        %1273 = vmatpush1.bf16.msra.mxu0 0
        %1274 = vmatprep.subr.bf16.mxu0 0
        %1275 = vmatpush1.bf16.msra.mxu0 0
        %1276 = vmatprep.subr.bf16.mxu0 0
        %1277 = vmatpush1.bf16.msra.mxu0 0
        %1278 = vmatprep.subr.bf16.mxu0 0
        %1279 = vmatpush1.bf16.msra.mxu0 0
        %1280 = vmatprep.subr.bf16.mxu0 0
        %1281 = vmatpush1.bf16.msra.mxu0 0
        %1282 = vmatprep.subr.bf16.mxu0 0
        %1283 = vmatpush1.bf16.msra.mxu0 0
        %1284 = vmatprep.subr.bf16.mxu0 0
        %1285 = vmatpush1.bf16.msra.mxu0 0
        %1286 = vmatprep.subr.bf16.mxu0 0
        %1287 = vmatpush1.bf16.msra.mxu0 0
        %1288 = vmatprep.subr.bf16.mxu0 0
        %1289 = vmatpush1.bf16.msra.mxu0 0
        %1290 = vmatprep.subr.bf16.mxu0 0
        %1291 = vmatpush1.bf16.msra.mxu0 0
        %1292 = vmatprep.subr.bf16.mxu0 0
        %1293 = vmatpush1.bf16.msra.mxu0 0
        %1294 = vmatprep.subr.bf16.mxu0 0
        %1295 = vmatpush1.bf16.msra.mxu0 0
        %1296 = vmatprep.subr.bf16.mxu0 0
        %1297 = vmatpush1.bf16.msra.mxu0 0
        %1298 = vmatprep.subr.bf16.mxu0 0
        %1299 = vmatpush1.bf16.msra.mxu0 0
        %1300 = vmatprep.subr.bf16.mxu0 0
        %1301 = vmatpush1.bf16.msra.mxu0 0
        %1302 = vmatprep.mubr.bf16.mxu0 0
        %1303 = vmatmul.mubr.bf16.gmra.mrb[0].mxu0 %v1264
        %v1304 = vpop.f32.mrb[0].mxu0
        %v1305 = vadd.f32 0.0, %v1304
        %v1306 = vpop.f32.mrb[0].mxu0
        %v1307 = vpop.f32.mrb[0].mxu0
        %v1308 = vpop.f32.mrb[0].mxu0
        %1309 = vdwg.mxu0
        %v1310 = vadd.f32 %v1261, %v1305
        %1311 = vst.msk [vmem:[#allocation5] sm:$0xff] %vm1184, %v1310
        %1312 = vst.msk [vmem:[#allocation3] sm:$0xff] %vm1253, %v1235
        %v1313 = vld [vmem:[#allocation2] sm:$0xf]
        %v1315 = vunpack.c.l.b16 %v1313
        %v1316 = vpack.c.b16 %v1315, %v1315
        %1317 = vrot.lane.b32.xlu0 %v1316, 120
        %v1318 = vpop.permute.xlu0 %1317
        %1320 = vrot.lane.b32.xlu0 %v803, 120
        %v1321 = vpop.permute.xlu0 %1320
        %1322 = vset.pattern.permute.xlu0 1
        %1323 = vperm.xlu0 %1322, %v1072
        %v1324 = vpop.permute.xlu0 %1323
        %1325 = vset.pattern.permute.xlu0 1
        %1326 = vperm.xlu0 %1325, %v1075
        %v1327 = vpop.permute.xlu0 %1326
        %1328 = vset.pattern.permute.xlu0 1
        %1329 = vperm.xlu0 %1328, %v1080
        %v1330 = vpop.permute.xlu0 %1329
        %1331 = vset.pattern.permute.xlu0 1
        %1332 = vperm.xlu0 %1331, %v1083
        %v1333 = vpop.permute.xlu0 %1332
        %1334 = vset.pattern.permute.xlu0 1
        %1335 = vperm.xlu0 %1334, %v1088
        %v1336 = vpop.permute.xlu0 %1335
        %1337 = vset.pattern.permute.xlu0 1
        %1338 = vperm.xlu0 %1337, %v1091
        %v1339 = vpop.permute.xlu0 %1338
        %1340 = vset.pattern.permute.xlu0 1
        %1341 = vperm.xlu0 %1340, %v1096
        %v1342 = vpop.permute.xlu0 %1341
        %1343 = vset.pattern.permute.xlu0 1
        %1344 = vperm.xlu0 %1343, %v1099
        %v1345 = vpop.permute.xlu0 %1344
        %v1346 = vlaneseq
        %v1347 = vshrl.u32 %v1346, 7
        %v1348 = vsub.s32 %v1136, %v1347
        %v1349 = vrot.slane %v1324, %v1348
        %v1350 = vlaneseq
        %v1351 = vshrl.u32 %v1350, 7
        %v1352 = vsub.s32 %v1136, %v1351
        %v1353 = vrot.slane %v1327, %v1352
        %v1354 = vlaneseq
        %v1355 = vshrl.u32 %v1354, 7
        %v1356 = vsub.s32 %v1136, %v1355
        %v1357 = vrot.slane %v1330, %v1356
        %v1358 = vlaneseq
        %v1359 = vshrl.u32 %v1358, 7
        %v1360 = vsub.s32 %v1136, %v1359
        %v1361 = vrot.slane %v1333, %v1360
        %v1362 = vlaneseq
        %v1363 = vshrl.u32 %v1362, 7
        %v1364 = vsub.s32 %v1136, %v1363
        %v1365 = vrot.slane %v1336, %v1364
        %v1366 = vlaneseq
        %v1367 = vshrl.u32 %v1366, 7
        %v1368 = vsub.s32 %v1136, %v1367
        %v1369 = vrot.slane %v1339, %v1368
        %v1370 = vlaneseq
        %v1371 = vshrl.u32 %v1370, 7
        %v1372 = vsub.s32 %v1136, %v1371
        %v1373 = vrot.slane %v1342, %v1372
        %v1374 = vlaneseq
        %v1375 = vshrl.u32 %v1374, 7
        %v1376 = vsub.s32 %v1136, %v1375
        %v1377 = vrot.slane %v1345, %v1376
        %v1378 = vsel %vm1169, %v1353, %v1349
        %v1379 = vsel %vm1171, %v1357, %v1378
        %v1380 = vsel %vm1173, %v1361, %v1379
        %v1381 = vsel %vm1175, %v1365, %v1380
        %v1382 = vsel %vm1177, %v1369, %v1381
        %v1383 = vsel %vm1179, %v1373, %v1382
        %v1384 = vsel %vm1181, %v1377, %v1383
        %v1387 = vsel %vm1184, %v1318, 0
        %v1390 = vsel %vm1184, %v1321, 0
        %1392 = vmatprep.subr.bf16.mxu0 0
        %1393 = vmatpush1.bf16.xpose.msra.mxu0 %v1390
        %1394 = vmatprep.subr.bf16.mxu0 0
        %1395 = vmatpush1.bf16.xpose.msra.mxu0 0
        %1396 = vmatprep.subr.bf16.mxu0 0
        %1397 = vmatpush1.bf16.xpose.msra.mxu0 0
        %1398 = vmatprep.subr.bf16.mxu0 0
        %1399 = vmatpush1.bf16.xpose.msra.mxu0 0
        %1400 = vmatprep.subr.bf16.mxu0 0
        %1401 = vmatpush1.bf16.xpose.msra.mxu0 0
        %1402 = vmatprep.subr.bf16.mxu0 0
        %1403 = vmatpush1.bf16.xpose.msra.mxu0 0
        %1404 = vmatprep.subr.bf16.mxu0 0
        %1405 = vmatpush1.bf16.xpose.msra.mxu0 0
        %1406 = vmatprep.subr.bf16.mxu0 0
        %1407 = vmatpush1.bf16.xpose.msra.mxu0 0
        %1408 = vmatprep.subr.bf16.mxu0 0
        %1409 = vmatpush1.bf16.xpose.msra.mxu0 0
        %1410 = vmatprep.subr.bf16.mxu0 0
        %1411 = vmatpush1.bf16.xpose.msra.mxu0 0
        %1412 = vmatprep.subr.bf16.mxu0 0
        %1413 = vmatpush1.bf16.xpose.msra.mxu0 0
        %1414 = vmatprep.subr.bf16.mxu0 0
        %1415 = vmatpush1.bf16.xpose.msra.mxu0 0
        %1416 = vmatprep.subr.bf16.mxu0 0
        %1417 = vmatpush1.bf16.xpose.msra.mxu0 0
        %1418 = vmatprep.subr.bf16.mxu0 0
        %1419 = vmatpush1.bf16.xpose.msra.mxu0 0
        %1420 = vmatprep.subr.bf16.mxu0 0
        %1421 = vmatpush1.bf16.xpose.msra.mxu0 0
        %1422 = vmatprep.subr.bf16.mxu0 0
        %1423 = vmatpush1.bf16.xpose.msra.mxu0 0
        %1424 = vmatprep.mubr.bf16.mxu0 0
        %1425 = vmatmul.mubr.bf16.gmra.mrb[0].mxu0 %v1387
        %v1426 = vpop.f32.mrb[0].mxu0
        %v1427 = vadd.f32 %v1384, %v1426
        %v1428 = vpop.f32.mrb[0].mxu0
        %v1429 = vpop.f32.mrb[0].mxu0
        %v1430 = vpop.f32.mrb[0].mxu0
        %1431 = vdwg.mxu0
        %s1432 = scalar_lea.vmem [#allocation3], 8
        %v1433 = vld [vmem:[%s1432] sm:$0xff]
        %v1434 = vsel %vm1184, %v1427, -inf
        %1435 = vmax.xlane.f32.xlu0 %v1434
        %v1436 = vpop.xlane.xlu0 %1435
        %v1437 = vmax.f32 %v1433, %v1436
        %v1438 = vsub.f32 %v1433, %v1437
        %v1439 = vmul.f32 %v1438, 1.442695
        %v1440 = vpow.pop %v1439
        %1442 = vset.pattern.permute.xlu0 0
        %1443 = vperm.xlu0 %1442, %v1437
        %v1444 = vpop.permute.xlu0 %1443
        %v1446 = vsub.f32 %v1427, %v1444
        %v1447 = vmul.f32 %v1446, 1.442695
        %v1448 = vpow.pop %v1447
        %s1449 = scalar_lea.vmem [#allocation4], 8
        %v1450 = vld [vmem:[%s1449] sm:$0xff]
        %v1451 = vmul.f32 %v1440, %v1450
        %v1452 = vsel %vm1184, %v1448, 0.0
        %1453 = vadd.xlane.f32.xlu0 %v1452
        %v1454 = vpop.xlane.xlu0 %1453
        %v1455 = vadd.f32 %v1451, %v1454
        %1456 = vst.msk [vmem:[%s1449] sm:$0xff] %vm1253, %v1455
        %s1457 = scalar_lea.vmem [#allocation5], 8
        %v1458 = vld [vmem:[%s1457] sm:$0xff]
        %1460 = vset.pattern.permute.xlu0 0
        %1461 = vperm.xlu0 %1460, %v1440
        %v1462 = vpop.permute.xlu0 %1461
        %v1464 = vmul.f32 %v1462, %v1458
        %v1465 = vpack.c.bf16 %v1448, %v1448
        %1467 = vrot.lane.b32.xlu0 %v860, 120
        %v1468 = vpop.permute.xlu0 %1467
        %v1470 = vsel %vm1184, %v1465, 0
        %v1473 = vsel %vm1266, %v1468, 0
        %1475 = vmatprep.subr.bf16.mxu0 0
        %1476 = vmatpush1.bf16.msra.mxu0 %v1473
        %1477 = vmatprep.subr.bf16.mxu0 0
        %1478 = vmatpush1.bf16.msra.mxu0 0
        %1479 = vmatprep.subr.bf16.mxu0 0
        %1480 = vmatpush1.bf16.msra.mxu0 0
        %1481 = vmatprep.subr.bf16.mxu0 0
        %1482 = vmatpush1.bf16.msra.mxu0 0
        %1483 = vmatprep.subr.bf16.mxu0 0
        %1484 = vmatpush1.bf16.msra.mxu0 0
        %1485 = vmatprep.subr.bf16.mxu0 0
        %1486 = vmatpush1.bf16.msra.mxu0 0
        %1487 = vmatprep.subr.bf16.mxu0 0
        %1488 = vmatpush1.bf16.msra.mxu0 0
        %1489 = vmatprep.subr.bf16.mxu0 0
        %1490 = vmatpush1.bf16.msra.mxu0 0
        %1491 = vmatprep.subr.bf16.mxu0 0
        %1492 = vmatpush1.bf16.msra.mxu0 0
        %1493 = vmatprep.subr.bf16.mxu0 0
        %1494 = vmatpush1.bf16.msra.mxu0 0
        %1495 = vmatprep.subr.bf16.mxu0 0
        %1496 = vmatpush1.bf16.msra.mxu0 0
        %1497 = vmatprep.subr.bf16.mxu0 0
        %1498 = vmatpush1.bf16.msra.mxu0 0
        %1499 = vmatprep.subr.bf16.mxu0 0
        %1500 = vmatpush1.bf16.msra.mxu0 0
        %1501 = vmatprep.subr.bf16.mxu0 0
        %1502 = vmatpush1.bf16.msra.mxu0 0
        %1503 = vmatprep.subr.bf16.mxu0 0
        %1504 = vmatpush1.bf16.msra.mxu0 0
        %1505 = vmatprep.subr.bf16.mxu0 0
        %1506 = vmatpush1.bf16.msra.mxu0 0
        %1507 = vmatprep.mubr.bf16.mxu0 0
        %1508 = vmatmul.mubr.bf16.gmra.mrb[0].mxu0 %v1470
        %v1509 = vpop.f32.mrb[0].mxu0
        %v1510 = vadd.f32 0.0, %v1509
        %v1511 = vpop.f32.mrb[0].mxu0
        %v1512 = vpop.f32.mrb[0].mxu0
        %v1513 = vpop.f32.mrb[0].mxu0
        %1514 = vdwg.mxu0
        %v1515 = vadd.f32 %v1464, %v1510
        %1516 = vst.msk [vmem:[%s1457] sm:$0xff] %vm1184, %v1515
        %1517 = vst.msk [vmem:[%s1432] sm:$0xff] %vm1253, %v1437
        %v1518 = vld [vmem:[#allocation2] sm:$0xf]
        %v1520 = vunpack.c.l.b16 %v1518
        %v1521 = vpack.c.b16 %v1520, %v1520
        %1522 = vrot.lane.b32.xlu0 %v1521, 112
        %v1523 = vpop.permute.xlu0 %1522
        %1524 = vrot.lane.b32.xlu0 %v803, 112
        %v1525 = vpop.permute.xlu0 %1524
        %1526 = vset.pattern.permute.xlu0 2
        %1527 = vperm.xlu0 %1526, %v1072
        %v1528 = vpop.permute.xlu0 %1527
        %1529 = vset.pattern.permute.xlu0 2
        %1530 = vperm.xlu0 %1529, %v1075
        %v1531 = vpop.permute.xlu0 %1530
        %1532 = vset.pattern.permute.xlu0 2
        %1533 = vperm.xlu0 %1532, %v1080
        %v1534 = vpop.permute.xlu0 %1533
        %1535 = vset.pattern.permute.xlu0 2
        %1536 = vperm.xlu0 %1535, %v1083
        %v1537 = vpop.permute.xlu0 %1536
        %1538 = vset.pattern.permute.xlu0 2
        %1539 = vperm.xlu0 %1538, %v1088
        %v1540 = vpop.permute.xlu0 %1539
        %1541 = vset.pattern.permute.xlu0 2
        %1542 = vperm.xlu0 %1541, %v1091
        %v1543 = vpop.permute.xlu0 %1542
        %1544 = vset.pattern.permute.xlu0 2
        %1545 = vperm.xlu0 %1544, %v1096
        %v1546 = vpop.permute.xlu0 %1545
        %1547 = vset.pattern.permute.xlu0 2
        %1548 = vperm.xlu0 %1547, %v1099
        %v1549 = vpop.permute.xlu0 %1548
        %v1550 = vlaneseq
        %v1551 = vshrl.u32 %v1550, 7
        %v1552 = vsub.s32 %v1136, %v1551
        %v1553 = vrot.slane %v1528, %v1552
        %v1554 = vlaneseq
        %v1555 = vshrl.u32 %v1554, 7
        %v1556 = vsub.s32 %v1136, %v1555
        %v1557 = vrot.slane %v1531, %v1556
        %v1558 = vlaneseq
        %v1559 = vshrl.u32 %v1558, 7
        %v1560 = vsub.s32 %v1136, %v1559
        %v1561 = vrot.slane %v1534, %v1560
        %v1562 = vlaneseq
        %v1563 = vshrl.u32 %v1562, 7
        %v1564 = vsub.s32 %v1136, %v1563
        %v1565 = vrot.slane %v1537, %v1564
        %v1566 = vlaneseq
        %v1567 = vshrl.u32 %v1566, 7
        %v1568 = vsub.s32 %v1136, %v1567
        %v1569 = vrot.slane %v1540, %v1568
        %v1570 = vlaneseq
        %v1571 = vshrl.u32 %v1570, 7
        %v1572 = vsub.s32 %v1136, %v1571
        %v1573 = vrot.slane %v1543, %v1572
        %v1574 = vlaneseq
        %v1575 = vshrl.u32 %v1574, 7
        %v1576 = vsub.s32 %v1136, %v1575
        %v1577 = vrot.slane %v1546, %v1576
        %v1578 = vlaneseq
        %v1579 = vshrl.u32 %v1578, 7
        %v1580 = vsub.s32 %v1136, %v1579
        %v1581 = vrot.slane %v1549, %v1580
        %v1582 = vsel %vm1169, %v1557, %v1553
        %v1583 = vsel %vm1171, %v1561, %v1582
        %v1584 = vsel %vm1173, %v1565, %v1583
        %v1585 = vsel %vm1175, %v1569, %v1584
        %v1586 = vsel %vm1177, %v1573, %v1585
        %v1587 = vsel %vm1179, %v1577, %v1586
        %v1588 = vsel %vm1181, %v1581, %v1587
        %v1591 = vsel %vm1184, %v1523, 0
        %v1594 = vsel %vm1184, %v1525, 0
        %1596 = vmatprep.subr.bf16.mxu0 0
        %1597 = vmatpush1.bf16.xpose.msra.mxu0 %v1594
        %1598 = vmatprep.subr.bf16.mxu0 0
        %1599 = vmatpush1.bf16.xpose.msra.mxu0 0
        %1600 = vmatprep.subr.bf16.mxu0 0
        %1601 = vmatpush1.bf16.xpose.msra.mxu0 0
        %1602 = vmatprep.subr.bf16.mxu0 0
        %1603 = vmatpush1.bf16.xpose.msra.mxu0 0
        %1604 = vmatprep.subr.bf16.mxu0 0
        %1605 = vmatpush1.bf16.xpose.msra.mxu0 0
        %1606 = vmatprep.subr.bf16.mxu0 0
        %1607 = vmatpush1.bf16.xpose.msra.mxu0 0
        %1608 = vmatprep.subr.bf16.mxu0 0
        %1609 = vmatpush1.bf16.xpose.msra.mxu0 0
        %1610 = vmatprep.subr.bf16.mxu0 0
        %1611 = vmatpush1.bf16.xpose.msra.mxu0 0
        %1612 = vmatprep.subr.bf16.mxu0 0
        %1613 = vmatpush1.bf16.xpose.msra.mxu0 0
        %1614 = vmatprep.subr.bf16.mxu0 0
        %1615 = vmatpush1.bf16.xpose.msra.mxu0 0
        %1616 = vmatprep.subr.bf16.mxu0 0
        %1617 = vmatpush1.bf16.xpose.msra.mxu0 0
        %1618 = vmatprep.subr.bf16.mxu0 0
        %1619 = vmatpush1.bf16.xpose.msra.mxu0 0
        %1620 = vmatprep.subr.bf16.mxu0 0
        %1621 = vmatpush1.bf16.xpose.msra.mxu0 0
        %1622 = vmatprep.subr.bf16.mxu0 0
        %1623 = vmatpush1.bf16.xpose.msra.mxu0 0
        %1624 = vmatprep.subr.bf16.mxu0 0
        %1625 = vmatpush1.bf16.xpose.msra.mxu0 0
        %1626 = vmatprep.subr.bf16.mxu0 0
        %1627 = vmatpush1.bf16.xpose.msra.mxu0 0
        %1628 = vmatprep.mubr.bf16.mxu0 0
        %1629 = vmatmul.mubr.bf16.gmra.mrb[0].mxu0 %v1591
        %v1630 = vpop.f32.mrb[0].mxu0
        %v1631 = vadd.f32 %v1588, %v1630
        %v1632 = vpop.f32.mrb[0].mxu0
        %v1633 = vpop.f32.mrb[0].mxu0
        %v1634 = vpop.f32.mrb[0].mxu0
        %1635 = vdwg.mxu0
        %s1636 = scalar_lea.vmem [#allocation3], 16
        %v1637 = vld [vmem:[%s1636] sm:$0xff]
        %v1638 = vsel %vm1184, %v1631, -inf
        %1639 = vmax.xlane.f32.xlu0 %v1638
        %v1640 = vpop.xlane.xlu0 %1639
        %v1641 = vmax.f32 %v1637, %v1640
        %v1642 = vsub.f32 %v1637, %v1641
        %v1643 = vmul.f32 %v1642, 1.442695
        %v1644 = vpow.pop %v1643
        %1646 = vset.pattern.permute.xlu0 0
        %1647 = vperm.xlu0 %1646, %v1641
        %v1648 = vpop.permute.xlu0 %1647
        %v1650 = vsub.f32 %v1631, %v1648
        %v1651 = vmul.f32 %v1650, 1.442695
        %v1652 = vpow.pop %v1651
        %s1653 = scalar_lea.vmem [#allocation4], 16
        %v1654 = vld [vmem:[%s1653] sm:$0xff]
        %v1655 = vmul.f32 %v1644, %v1654
        %v1656 = vsel %vm1184, %v1652, 0.0
        %1657 = vadd.xlane.f32.xlu0 %v1656
        %v1658 = vpop.xlane.xlu0 %1657
        %v1659 = vadd.f32 %v1655, %v1658
        %1660 = vst.msk [vmem:[%s1653] sm:$0xff] %vm1253, %v1659
        %s1661 = scalar_lea.vmem [#allocation5], 16
        %v1662 = vld [vmem:[%s1661] sm:$0xff]
        %1664 = vset.pattern.permute.xlu0 0
        %1665 = vperm.xlu0 %1664, %v1644
        %v1666 = vpop.permute.xlu0 %1665
        %v1668 = vmul.f32 %v1666, %v1662
        %v1669 = vpack.c.bf16 %v1652, %v1652
        %1670 = vrot.lane.b32.xlu0 %v860, 112
        %v1671 = vpop.permute.xlu0 %1670
        %v1673 = vsel %vm1184, %v1669, 0
        %v1676 = vsel %vm1266, %v1671, 0
        %1678 = vmatprep.subr.bf16.mxu0 0
        %1679 = vmatpush1.bf16.msra.mxu0 %v1676
        %1680 = vmatprep.subr.bf16.mxu0 0
        %1681 = vmatpush1.bf16.msra.mxu0 0
        %1682 = vmatprep.subr.bf16.mxu0 0
        %1683 = vmatpush1.bf16.msra.mxu0 0
        %1684 = vmatprep.subr.bf16.mxu0 0
        %1685 = vmatpush1.bf16.msra.mxu0 0
        %1686 = vmatprep.subr.bf16.mxu0 0
        %1687 = vmatpush1.bf16.msra.mxu0 0
        %1688 = vmatprep.subr.bf16.mxu0 0
        %1689 = vmatpush1.bf16.msra.mxu0 0
        %1690 = vmatprep.subr.bf16.mxu0 0
        %1691 = vmatpush1.bf16.msra.mxu0 0
        %1692 = vmatprep.subr.bf16.mxu0 0
        %1693 = vmatpush1.bf16.msra.mxu0 0
        %1694 = vmatprep.subr.bf16.mxu0 0
        %1695 = vmatpush1.bf16.msra.mxu0 0
        %1696 = vmatprep.subr.bf16.mxu0 0
        %1697 = vmatpush1.bf16.msra.mxu0 0
        %1698 = vmatprep.subr.bf16.mxu0 0
        %1699 = vmatpush1.bf16.msra.mxu0 0
        %1700 = vmatprep.subr.bf16.mxu0 0
        %1701 = vmatpush1.bf16.msra.mxu0 0
        %1702 = vmatprep.subr.bf16.mxu0 0
        %1703 = vmatpush1.bf16.msra.mxu0 0
        %1704 = vmatprep.subr.bf16.mxu0 0
        %1705 = vmatpush1.bf16.msra.mxu0 0
        %1706 = vmatprep.subr.bf16.mxu0 0
        %1707 = vmatpush1.bf16.msra.mxu0 0
        %1708 = vmatprep.subr.bf16.mxu0 0
        %1709 = vmatpush1.bf16.msra.mxu0 0
        %1710 = vmatprep.mubr.bf16.mxu0 0
        %1711 = vmatmul.mubr.bf16.gmra.mrb[0].mxu0 %v1673
        %v1712 = vpop.f32.mrb[0].mxu0
        %v1713 = vadd.f32 0.0, %v1712
        %v1714 = vpop.f32.mrb[0].mxu0
        %v1715 = vpop.f32.mrb[0].mxu0
        %v1716 = vpop.f32.mrb[0].mxu0
        %1717 = vdwg.mxu0
        %v1718 = vadd.f32 %v1668, %v1713
        %1719 = vst.msk [vmem:[%s1661] sm:$0xff] %vm1184, %v1718
        %1720 = vst.msk [vmem:[%s1636] sm:$0xff] %vm1253, %v1641
        %v1721 = vld [vmem:[#allocation2] sm:$0xf]
        %v1723 = vunpack.c.l.b16 %v1721
        %v1724 = vpack.c.b16 %v1723, %v1723
        %1725 = vrot.lane.b32.xlu0 %v1724, 104
        %v1726 = vpop.permute.xlu0 %1725
        %1727 = vrot.lane.b32.xlu0 %v803, 104
        %v1728 = vpop.permute.xlu0 %1727
        %1729 = vset.pattern.permute.xlu0 3
        %1730 = vperm.xlu0 %1729, %v1072
        %v1731 = vpop.permute.xlu0 %1730
        %1732 = vset.pattern.permute.xlu0 3
        %1733 = vperm.xlu0 %1732, %v1075
        %v1734 = vpop.permute.xlu0 %1733
        %1735 = vset.pattern.permute.xlu0 3
        %1736 = vperm.xlu0 %1735, %v1080
        %v1737 = vpop.permute.xlu0 %1736
        %1738 = vset.pattern.permute.xlu0 3
        %1739 = vperm.xlu0 %1738, %v1083
        %v1740 = vpop.permute.xlu0 %1739
        %1741 = vset.pattern.permute.xlu0 3
        %1742 = vperm.xlu0 %1741, %v1088
        %v1743 = vpop.permute.xlu0 %1742
        %1744 = vset.pattern.permute.xlu0 3
        %1745 = vperm.xlu0 %1744, %v1091
        %v1746 = vpop.permute.xlu0 %1745
        %1747 = vset.pattern.permute.xlu0 3
        %1748 = vperm.xlu0 %1747, %v1096
        %v1749 = vpop.permute.xlu0 %1748
        %1750 = vset.pattern.permute.xlu0 3
        %1751 = vperm.xlu0 %1750, %v1099
        %v1752 = vpop.permute.xlu0 %1751
        %v1753 = vlaneseq
        %v1754 = vshrl.u32 %v1753, 7
        %v1755 = vsub.s32 %v1136, %v1754
        %v1756 = vrot.slane %v1731, %v1755
        %v1757 = vlaneseq
        %v1758 = vshrl.u32 %v1757, 7
        %v1759 = vsub.s32 %v1136, %v1758
        %v1760 = vrot.slane %v1734, %v1759
        %v1761 = vlaneseq
        %v1762 = vshrl.u32 %v1761, 7
        %v1763 = vsub.s32 %v1136, %v1762
        %v1764 = vrot.slane %v1737, %v1763
        %v1765 = vlaneseq
        %v1766 = vshrl.u32 %v1765, 7
        %v1767 = vsub.s32 %v1136, %v1766
        %v1768 = vrot.slane %v1740, %v1767
        %v1769 = vlaneseq
        %v1770 = vshrl.u32 %v1769, 7
        %v1771 = vsub.s32 %v1136, %v1770
        %v1772 = vrot.slane %v1743, %v1771
        %v1773 = vlaneseq
        %v1774 = vshrl.u32 %v1773, 7
        %v1775 = vsub.s32 %v1136, %v1774
        %v1776 = vrot.slane %v1746, %v1775
        %v1777 = vlaneseq
        %v1778 = vshrl.u32 %v1777, 7
        %v1779 = vsub.s32 %v1136, %v1778
        %v1780 = vrot.slane %v1749, %v1779
        %v1781 = vlaneseq
        %v1782 = vshrl.u32 %v1781, 7
        %v1783 = vsub.s32 %v1136, %v1782
        %v1784 = vrot.slane %v1752, %v1783
        %v1785 = vsel %vm1169, %v1760, %v1756
        %v1786 = vsel %vm1171, %v1764, %v1785
        %v1787 = vsel %vm1173, %v1768, %v1786
        %v1788 = vsel %vm1175, %v1772, %v1787
        %v1789 = vsel %vm1177, %v1776, %v1788
        %v1790 = vsel %vm1179, %v1780, %v1789
        %v1791 = vsel %vm1181, %v1784, %v1790
        %v1794 = vsel %vm1184, %v1726, 0
        %v1797 = vsel %vm1184, %v1728, 0
        %1799 = vmatprep.subr.bf16.mxu0 0
        %1800 = vmatpush1.bf16.xpose.msra.mxu0 %v1797
        %1801 = vmatprep.subr.bf16.mxu0 0
        %1802 = vmatpush1.bf16.xpose.msra.mxu0 0
        %1803 = vmatprep.subr.bf16.mxu0 0
        %1804 = vmatpush1.bf16.xpose.msra.mxu0 0
        %1805 = vmatprep.subr.bf16.mxu0 0
        %1806 = vmatpush1.bf16.xpose.msra.mxu0 0
        %1807 = vmatprep.subr.bf16.mxu0 0
        %1808 = vmatpush1.bf16.xpose.msra.mxu0 0
        %1809 = vmatprep.subr.bf16.mxu0 0
        %1810 = vmatpush1.bf16.xpose.msra.mxu0 0
        %1811 = vmatprep.subr.bf16.mxu0 0
        %1812 = vmatpush1.bf16.xpose.msra.mxu0 0
        %1813 = vmatprep.subr.bf16.mxu0 0
        %1814 = vmatpush1.bf16.xpose.msra.mxu0 0
        %1815 = vmatprep.subr.bf16.mxu0 0
        %1816 = vmatpush1.bf16.xpose.msra.mxu0 0
        %1817 = vmatprep.subr.bf16.mxu0 0
        %1818 = vmatpush1.bf16.xpose.msra.mxu0 0
        %1819 = vmatprep.subr.bf16.mxu0 0
        %1820 = vmatpush1.bf16.xpose.msra.mxu0 0
        %1821 = vmatprep.subr.bf16.mxu0 0
        %1822 = vmatpush1.bf16.xpose.msra.mxu0 0
        %1823 = vmatprep.subr.bf16.mxu0 0
        %1824 = vmatpush1.bf16.xpose.msra.mxu0 0
        %1825 = vmatprep.subr.bf16.mxu0 0
        %1826 = vmatpush1.bf16.xpose.msra.mxu0 0
        %1827 = vmatprep.subr.bf16.mxu0 0
        %1828 = vmatpush1.bf16.xpose.msra.mxu0 0
        %1829 = vmatprep.subr.bf16.mxu0 0
        %1830 = vmatpush1.bf16.xpose.msra.mxu0 0
        %1831 = vmatprep.mubr.bf16.mxu0 0
        %1832 = vmatmul.mubr.bf16.gmra.mrb[0].mxu0 %v1794
        %v1833 = vpop.f32.mrb[0].mxu0
        %v1834 = vadd.f32 %v1791, %v1833
        %v1835 = vpop.f32.mrb[0].mxu0
        %v1836 = vpop.f32.mrb[0].mxu0
        %v1837 = vpop.f32.mrb[0].mxu0
        %1838 = vdwg.mxu0
        %s1839 = scalar_lea.vmem [#allocation3], 24
        %v1840 = vld [vmem:[%s1839] sm:$0xff]
        %v1841 = vsel %vm1184, %v1834, -inf
        %1842 = vmax.xlane.f32.xlu0 %v1841
        %v1843 = vpop.xlane.xlu0 %1842
        %v1844 = vmax.f32 %v1840, %v1843
        %v1845 = vsub.f32 %v1840, %v1844
        %v1846 = vmul.f32 %v1845, 1.442695
        %v1847 = vpow.pop %v1846
        %1849 = vset.pattern.permute.xlu0 0
        %1850 = vperm.xlu0 %1849, %v1844
        %v1851 = vpop.permute.xlu0 %1850
        %v1853 = vsub.f32 %v1834, %v1851
        %v1854 = vmul.f32 %v1853, 1.442695
        %v1855 = vpow.pop %v1854
        %s1856 = scalar_lea.vmem [#allocation4], 24
        %v1857 = vld [vmem:[%s1856] sm:$0xff]
        %v1858 = vmul.f32 %v1847, %v1857
        %v1859 = vsel %vm1184, %v1855, 0.0
        %1860 = vadd.xlane.f32.xlu0 %v1859
        %v1861 = vpop.xlane.xlu0 %1860
        %v1862 = vadd.f32 %v1858, %v1861
        %1863 = vst.msk [vmem:[%s1856] sm:$0xff] %vm1253, %v1862
        %s1864 = scalar_lea.vmem [#allocation5], 24
        %v1865 = vld [vmem:[%s1864] sm:$0xff]
        %1867 = vset.pattern.permute.xlu0 0
        %1868 = vperm.xlu0 %1867, %v1847
        %v1869 = vpop.permute.xlu0 %1868
        %v1871 = vmul.f32 %v1869, %v1865
        %v1872 = vpack.c.bf16 %v1855, %v1855
        %1873 = vrot.lane.b32.xlu0 %v860, 104
        %v1874 = vpop.permute.xlu0 %1873
        %v1876 = vsel %vm1184, %v1872, 0
        %v1879 = vsel %vm1266, %v1874, 0
        %1881 = vmatprep.subr.bf16.mxu0 0
        %1882 = vmatpush1.bf16.msra.mxu0 %v1879
        %1883 = vmatprep.subr.bf16.mxu0 0
        %1884 = vmatpush1.bf16.msra.mxu0 0
        %1885 = vmatprep.subr.bf16.mxu0 0
        %1886 = vmatpush1.bf16.msra.mxu0 0
        %1887 = vmatprep.subr.bf16.mxu0 0
        %1888 = vmatpush1.bf16.msra.mxu0 0
        %1889 = vmatprep.subr.bf16.mxu0 0
        %1890 = vmatpush1.bf16.msra.mxu0 0
        %1891 = vmatprep.subr.bf16.mxu0 0
        %1892 = vmatpush1.bf16.msra.mxu0 0
        %1893 = vmatprep.subr.bf16.mxu0 0
        %1894 = vmatpush1.bf16.msra.mxu0 0
        %1895 = vmatprep.subr.bf16.mxu0 0
        %1896 = vmatpush1.bf16.msra.mxu0 0
        %1897 = vmatprep.subr.bf16.mxu0 0
        %1898 = vmatpush1.bf16.msra.mxu0 0
        %1899 = vmatprep.subr.bf16.mxu0 0
        %1900 = vmatpush1.bf16.msra.mxu0 0
        %1901 = vmatprep.subr.bf16.mxu0 0
        %1902 = vmatpush1.bf16.msra.mxu0 0
        %1903 = vmatprep.subr.bf16.mxu0 0
        %1904 = vmatpush1.bf16.msra.mxu0 0
        %1905 = vmatprep.subr.bf16.mxu0 0
        %1906 = vmatpush1.bf16.msra.mxu0 0
        %1907 = vmatprep.subr.bf16.mxu0 0
        %1908 = vmatpush1.bf16.msra.mxu0 0
        %1909 = vmatprep.subr.bf16.mxu0 0
        %1910 = vmatpush1.bf16.msra.mxu0 0
        %1911 = vmatprep.subr.bf16.mxu0 0
        %1912 = vmatpush1.bf16.msra.mxu0 0
        %1913 = vmatprep.mubr.bf16.mxu0 0
        %1914 = vmatmul.mubr.bf16.gmra.mrb[0].mxu0 %v1876
        %v1915 = vpop.f32.mrb[0].mxu0
        %v1916 = vadd.f32 0.0, %v1915
        %v1917 = vpop.f32.mrb[0].mxu0
        %v1918 = vpop.f32.mrb[0].mxu0
        %v1919 = vpop.f32.mrb[0].mxu0
        %1920 = vdwg.mxu0
        %v1921 = vadd.f32 %v1871, %v1916
        %1922 = vst.msk [vmem:[%s1864] sm:$0xff] %vm1184, %v1921
        %1923 = vst.msk [vmem:[%s1839] sm:$0xff] %vm1253, %v1844
        %p1924 = scmp.eq.s32.totalorder %s41, 1
        // Predicated region
        $region97: #{tpu_custom_call.1} parent=71 // pred_check
          %p1925 = pneg %p1924
        $region98: #{tpu_custom_call.1} parent=71 // pred_check_branch
          %1927 = sbr.rel (%p1925) target = $region100
        $region99: #{tpu_custom_call.1} parent=71 // pred_region
          %v1928 = vld [vmem:[#allocation4] sm:$0xff]
          %v1929 = vrcp.pop %v1928
          %v1930 = vld [vmem:[#allocation5] sm:$0xff]
          %1932 = vset.pattern.permute.xlu0 0
          %1933 = vperm.xlu0 %1932, %v1929
          %v1934 = vpop.permute.xlu0 %1933
          %v1936 = vmul.f32 %v1930, %v1934
          %v1937 = vld [vmem:[%s1449] sm:$0xff]
          %v1938 = vrcp.pop %v1937
          %v1939 = vld [vmem:[%s1457] sm:$0xff]
          %1941 = vset.pattern.permute.xlu0 0
          %1942 = vperm.xlu0 %1941, %v1938
          %v1943 = vpop.permute.xlu0 %1942
          %v1945 = vmul.f32 %v1939, %v1943
          %v1946 = vld [vmem:[%s1653] sm:$0xff]
          %v1947 = vrcp.pop %v1946
          %v1948 = vld [vmem:[%s1661] sm:$0xff]
          %1950 = vset.pattern.permute.xlu0 0
          %1951 = vperm.xlu0 %1950, %v1947
          %v1952 = vpop.permute.xlu0 %1951
          %v1954 = vmul.f32 %v1948, %v1952
          %v1955 = vld [vmem:[%s1856] sm:$0xff]
          %v1956 = vrcp.pop %v1955
          %v1957 = vld [vmem:[%s1864] sm:$0xff]
          %1959 = vset.pattern.permute.xlu0 0
          %1960 = vperm.xlu0 %1959, %v1956
          %v1961 = vpop.permute.xlu0 %1960
          %v1963 = vmul.f32 %v1957, %v1961
          %1965 = vrot.lane.b32.xlu0 %v1945, 8
          %v1966 = vpop.permute.xlu0 %1965
          %1969 = vrot.lane.b32.xlu0 %v1954, 16
          %v1970 = vpop.permute.xlu0 %1969
          %1973 = vrot.lane.b32.xlu0 %v1963, 24
          %v1974 = vpop.permute.xlu0 %1973
          %v1976 = vsel %vm1184, %v1936, %v1966
          %v1977 = vsel %vm879, %v1976, %v1970
          %vm1978 = vcmask 195584
          %v1979 = vsel %vm1978, %v1977, %v1974
          %v1980 = vpack.c.bf16 %v1979, %v1979
          %v1981 = vld [vmem:[%s6] sm:$0xf]
          %v1982 = vld [vmem:[%s6 + $0x4] sm:$0xf]
          %v1983 = vld [vmem:[%s6 + $0x8] sm:$0xf]
          %v1984 = vld [vmem:[%s6 + $0xc] sm:$0xf]
          %v1985 = vld [vmem:[%s7] sm:$0x1]
          %v1987 = vlaneseq
          %v1988 = vshrl.u32 %v1987, 7
          %v1989 = vsub.s32 0, %v1988
          %v1990 = vrot.slane %v1985, %v1989
          %v1996 = vunpack.c.l.b16 %v1981
          %v1997 = vunpack.c.l.b16 %v1982
          %v1998 = vunpack.c.l.b16 %v1983
          %v1999 = vunpack.c.l.b16 %v1984
          %v2000 = vpack.c.b16 %v1997, %v1996
          %v2001 = vpack.c.b16 %v1999, %v1998
          %v2005 = vsel %vm714, %v1980, 0
          %2007 = vmatprep.subr.bf16.mxu0 0
          %2008 = vmatpush1.bf16.msra.mxu0 %v2000
          %2009 = vmatprep.subr.bf16.mxu0 0
          %2010 = vmatpush1.bf16.msra.mxu0 %v2001
          %2011 = vmatprep.subr.bf16.mxu0 0
          %2012 = vmatpush1.bf16.msra.mxu0 0
          %2013 = vmatprep.subr.bf16.mxu0 0
          %2014 = vmatpush1.bf16.msra.mxu0 0
          %2015 = vmatprep.subr.bf16.mxu0 0
          %2016 = vmatpush1.bf16.msra.mxu0 0
          %2017 = vmatprep.subr.bf16.mxu0 0
          %2018 = vmatpush1.bf16.msra.mxu0 0
          %2019 = vmatprep.subr.bf16.mxu0 0
          %2020 = vmatpush1.bf16.msra.mxu0 0
          %2021 = vmatprep.subr.bf16.mxu0 0
          %2022 = vmatpush1.bf16.msra.mxu0 0
          %2023 = vmatprep.subr.bf16.mxu0 0
          %2024 = vmatpush1.bf16.msra.mxu0 0
          %2025 = vmatprep.subr.bf16.mxu0 0
          %2026 = vmatpush1.bf16.msra.mxu0 0
          %2027 = vmatprep.subr.bf16.mxu0 0
          %2028 = vmatpush1.bf16.msra.mxu0 0
          %2029 = vmatprep.subr.bf16.mxu0 0
          %2030 = vmatpush1.bf16.msra.mxu0 0
          %2031 = vmatprep.subr.bf16.mxu0 0
          %2032 = vmatpush1.bf16.msra.mxu0 0
          %2033 = vmatprep.subr.bf16.mxu0 0
          %2034 = vmatpush1.bf16.msra.mxu0 0
          %2035 = vmatprep.subr.bf16.mxu0 0
          %2036 = vmatpush1.bf16.msra.mxu0 0
          %2037 = vmatprep.subr.bf16.mxu0 0
          %2038 = vmatpush1.bf16.msra.mxu0 0
          %2039 = vmatprep.mubr.bf16.mxu0 0
          %2040 = vmatmul.mubr.bf16.gmra.mrb[0].mxu0 %v2005
          %v2041 = vpop.f32.mrb[0].mxu0
          %v2042 = vadd.f32 %v1990, %v2041
          %v2043 = vpop.f32.mrb[0].mxu0
          %v2044 = vpop.f32.mrb[0].mxu0
          %v2045 = vpop.f32.mrb[0].mxu0
          %2046 = vdwg.mxu0
          %2047 = vst.msk [vmem:[%s595] sm:$0xff] %vm714, %v2042
        $region100: #{tpu_custom_call.1} parent=71 // pred_fallthru
          _
        %s2048 = sand.u32 %s359, 1
        %s2049 = scalar_lea.sflag [#allocation8], %s2048
        %s2050 = sand.u32 %s359, 1
        %s2051 = smul.addr %s2050, 8
        %s2052 = scalar_lea.vmem [#allocation15], %s2051
        // Predicated region
        $region101: #{tpu_custom_call.1} parent=71 // pred_check
          %p2053 = pneg %p369
        $region102: #{tpu_custom_call.1} parent=71 // pred_check_branch
          %2055 = sbr.rel (%p2053) target = $region104
        $region103: #{tpu_custom_call.1} parent=71 // pred_region
          %s2057 = ssub.s32 128, 128
          %2058 = vsyncadd %s2049, %s2057
          %s2059 = smul.addr %s39, 2
          %s2060 = sadd.s32 %s40, %s2059
          %s2061 = smul.addr %s2060, 128
          %s2062 = scalar_lea.hbm %s13, %s2061
          %s2064 = sshll.u32 %s2052, 4
          %s2065 = int_to_ptr.vmem [resolvable:$true] %s2064
          %2067 = dma.vmem_to_hbm [thread:$0]  %s2065, 128, %s2062, %s2049
        $region104: #{tpu_custom_call.1} parent=71 // pred_fallthru
          _
      $region72: #{tpu_custom_call.1} parent=5 // pred_fallthru
        _
      %p2068 = scmp.le.s32.totalorder 2, %s29
      // Predicated region
      $region105: #{tpu_custom_call.1} parent=5 // pred_check
        %p2069 = pneg %p2068
      $region106: #{tpu_custom_call.1} parent=5 // pred_check_branch
        %2071 = sbr.rel (%p2069) target = $region108
      $region107: #{tpu_custom_call.1} parent=5 // pred_region
        %s2072 = ssub.s32 %s29, 2
        // Predicated region
        $region109: #{tpu_custom_call.1} parent=107 // pred_check
          %p2073 = pneg %p375
        $region110: #{tpu_custom_call.1} parent=107 // pred_check_branch
          %2075 = sbr.rel (%p2073) target = $region112
        $region111: #{tpu_custom_call.1} parent=107 // pred_region
          %s2076 = sand.u32 %s360, 1
          %s2077 = scalar_lea.sflag [#allocation8], %s2076
          %s2078 = sand.u32 %s360, 1
          %s2079 = smul.addr %s2078, 8
          %s2080 = scalar_lea.vmem [#allocation15], %s2079
          %2081 = dma.done %s2077, 128
        $region112: #{tpu_custom_call.1} parent=107 // pred_fallthru
          _
      $region108: #{tpu_custom_call.1} parent=5 // pred_fallthru
        _
    $region6: #{tpu_custom_call.1} parent=1 // loop_footer
      %s33 = sadd.s32 1, %s29
    $region7: #{tpu_custom_call.1} parent=1 // loop_footer_branch
      %28 = sbr.rel target = $region3
    $region8: #{tpu_custom_call.1} parent=1 // loop_exit
      _
    %2082 = vsyncpa [#allocation7], 1
    %s2083 = scalar_lea.sflag [#allocation7], 1
    %2084 = vsyncpa %s2083, 1
    %2085 = vsyncpa [#allocation10], 1
    %s2086 = scalar_lea.sflag [#allocation10], 1
    %2087 = vsyncpa %s2086, 1
    %2088 = vsyncpa [#allocation13], 1
    %2089 = vsyncpa [#allocation8], 1
    %s2090 = scalar_lea.sflag [#allocation8], 1
    %2091 = vsyncpa %s2090, 1

</llo_original>
